<compile_context>
chip_gen: v7x
topology: tpu7x:2x2x1
jax: 0.10.0
libtpu: 0.0.40
codegen_flags: <defaults>
</compile_context>

<pallas_src>
import numpy as np
import jax
import jax.numpy as jnp
from jax.experimental import pallas as pl
from jax.experimental.pallas import tpu as pltpu


# ---------------------------------------------------------------------------
# Fused kernel factory (static dims closed over).
# Packed channel layout of the output: lane = (qh*2+qw)*W*Cout + j*Cout + d,
# i.e. upsampled pixel (2i+qh, 2j+qw, d) for kernel row i.
# ---------------------------------------------------------------------------
def _make_kernel(H, W, Cin, Cout):
    Lin = W * Cin            # input lane width
    L = W * Cout             # per-phase lane width

    def kernel(x_ref, m_ref, wdw_ref, pw_ref, sh_ref, o_ref):
        # ---- Stage 1: ConvTranspose2d(k=4,s=2,p=1) + BN0(scale folded) ------
        # One block-Toeplitz matmul on lane-dense rows; H halo rows are zero.
        x = x_ref[0]                                          # (H, W*Cin) f32
        zrow = jnp.zeros((1, Lin), jnp.float32)
        x_up = jnp.concatenate([zrow, x[:-1, :]], axis=0)     # row i = x[i-1]
        x_dn = jnp.concatenate([x[1:, :], zrow], axis=0)      # row i = x[i+1]
        x_cat = jnp.concatenate([x_up, x, x_dn], axis=1)      # (H, 3*W*Cin)
        y = jnp.dot(x_cat.astype(jnp.bfloat16), m_ref[...],
                    preferred_element_type=jnp.float32)       # (H, 4*W*Cout)

        # Per-channel BN shifts (scales already folded into weights); hoisted
        # broadcasts (used 4x each).
        sh = sh_ref[...]                                      # (3, W*Cout)
        b0_b = jnp.broadcast_to(sh[0:1, :], (H, L))
        b1_b = jnp.broadcast_to(sh[1:2, :], (H, L))
        b2_b = jnp.broadcast_to(sh[2:3, :], (H, L))

        # BN0 shift + ReLU -> four lane-dense (H, W*Cout) sub-pixel phase planes
        # (128-aligned lane slices of y, no relayout).
        planes = [jnp.maximum(y[:, p * L:(p + 1) * L] + b0_b, 0.0)
                  for p in range(4)]

        # Depthwise tap vectors (BN1 scale folded), broadcasts hoisted.
        wdw = wdw_ref[...]                                    # (9, W*Cout) f32
        tap_b = [jnp.broadcast_to(wdw[k:k + 1, :], (H, L)) for k in range(9)]
        pw_mat = pw_ref[...]                                  # (W*Cout, W*Cout) bf16

        # Shifted-plane builder: result[i, j*Cout+d] = plane[i+si, (j+sj)*Cout+d],
        # out-of-range -> 0.  W shifts = lane shifts (zero-column concat, XLU),
        # H shifts = sublane shifts.  Cached so each of the 16 distinct shifted
        # planes is built once.
        zrow_l = jnp.zeros((1, L), jnp.float32)
        zcol = jnp.zeros((H, Cout), jnp.float32)
        cache_h, cache_hw = {}, {}

        def shifted(pln, si, sj):
            if (pln, si) not in cache_h:
                p_ = planes[pln]
                if si == 1:
                    p_ = jnp.concatenate([p_[1:, :], zrow_l], axis=0)
                elif si == -1:
                    p_ = jnp.concatenate([zrow_l, p_[:-1, :]], axis=0)
                cache_h[(pln, si)] = p_
            if (pln, si, sj) not in cache_hw:
                p_ = cache_h[(pln, si)]
                if sj == 1:
                    p_ = jnp.concatenate([p_[:, Cout:], zcol], axis=1)
                elif sj == -1:
                    p_ = jnp.concatenate([zcol, p_[:, :L - Cout]], axis=1)
                cache_hw[(pln, si, sj)] = p_
            return cache_hw[(pln, si, sj)]

        # ---- Stage 2 + 3 per output phase: depthwise 3x3 + BN1 + ReLU, then
        # W-block-diagonal pointwise 1x1 + BN2 + ReLU, lane-dense store. -------
        for qh in range(2):
            for qw in range(2):
                acc = jnp.zeros((H, L), jnp.float32)
                for dh in (-1, 0, 1):
                    ph = (qh + dh) % 2
                    si = (qh + dh - ph) // 2
                    for dw in (-1, 0, 1):
                        pw_ph = (qw + dw) % 2
                        sj = (qw + dw - pw_ph) // 2
                        src = shifted(ph * 2 + pw_ph, si, sj)
                        acc = acc + src * tap_b[(dh + 1) * 3 + (dw + 1)]
                z = jnp.maximum(acc + b1_b, 0.0)
                out_p = jnp.dot(z.astype(jnp.bfloat16), pw_mat,
                                preferred_element_type=jnp.float32)
                out_p = jnp.maximum(out_p + b2_b, 0.0)
                q = qh * 2 + qw
                # 128-aligned, full-lane store into the (1, H, 4*W*Cout) block.
                o_ref[0, :, q * L:(q + 1) * L] = out_p.astype(o_ref.dtype)

    return kernel


# ---------------------------------------------------------------------------
# Forward pass (weight prep = tiny trace-time XLA ops).
# ---------------------------------------------------------------------------
def efficient_upsampling_forward(x_nchw, params):
    """x: (N, Cin, H, W) float32 -> (N, Cout, 2H, 2W) float32."""
    N, Cin, H, W = x_nchw.shape
    Cout = params["w_tconv"].shape[1]
    Lin, L = W * Cin, W * Cout

    # Lane-dense input layout (N, H, W*Cin).
    x = jnp.transpose(x_nchw, (0, 2, 3, 1)).reshape(N, H, Lin)

    # --- Stage-1 weight: sub-pixel decomposition of the 4x4/stride-2 kernel,
    # expanded to a block-Toeplitz matrix over whole lane-dense rows.
    # Tap (ti,tj) of phase (ph,pw) uses kernel element (3+ph-2*ti, 3+pw-2*tj);
    # out-of-range taps are structural zeros.  W-boundary zeros come from the
    # Toeplitz structure, H-boundary zeros from the zero halo rows in-kernel.
    wt = params["w_tconv"]                               # (Cin, Cout, 4, 4)
    zcc = jnp.zeros((Cin, Cout), wt.dtype)
    wsub = jnp.stack([
        jnp.stack([
            jnp.stack([wt[:, :, 3 + ph - 2 * ti, 3 + pw - 2 * tj]
                       if (0 <= 3 + ph - 2 * ti < 4 and 0 <= 3 + pw - 2 * tj < 4)
                       else zcc
                       for ph in range(2) for pw in range(2)], axis=1)
            for tj in range(3)], axis=0)
        for ti in range(3)], axis=0)                     # (ti, tj, Cin, 4, Cout)
    # T[t, jin, jout] = 1 iff jin == jout + t - 1
    T = np.stack([np.eye(W, k=1 - t, dtype=np.float32) for t in range(3)])
    m6 = jnp.einsum("tab,utcpd->uacpbd", T, wsub)        # (3, W, Cin, 4, W, Cout)
    m6 = m6 * params["bn0_scale"].reshape(1, 1, 1, 1, 1, Cout)   # fold BN0 scale
    m_up = m6.reshape(3 * Lin, 4 * L).astype(jnp.bfloat16)

    # --- Stage-2 weight: per-tap per-lane vectors (BN1 scale folded),
    # lane layout j*Cout + d (tiled over W).
    wdw = params["w_dw"] * params["bn1_scale"].reshape(1, 1, Cout)   # (3,3,Cout)
    wdw_vec = jnp.tile(wdw.reshape(9, 1, Cout), (1, W, 1)).reshape(9, L)

    # --- Stage-3 weight: W-block-diagonal pointwise matrix (BN2 scale folded).
    w_pw = params["w_pw"] * params["bn2_scale"]          # (Cout, Cout), cols scaled
    eye_w = jnp.eye(W, dtype=w_pw.dtype)
    pw_blk = jnp.einsum("jk,cd->jckd", eye_w, w_pw).reshape(L, L).astype(jnp.bfloat16)

    # --- BN shifts, stacked into one (3, W*Cout) input (tiled over W).
    def tile_c(v):
        return jnp.tile(v.reshape(1, Cout), (W, 1)).reshape(L)
    shifts = jnp.stack([tile_c(params["bn0_shift"]),
                        tile_c(params["bn1_shift"]),
                        tile_c(params["bn2_shift"])], axis=0)

    kernel = _make_kernel(H, W, Cin, Cout)
    full2 = lambda n: (0, 0)
    out_packed = pl.pallas_call(
        kernel,
        out_shape=jax.ShapeDtypeStruct((N, H, 4 * L), jnp.float32),
        grid_spec=pltpu.PrefetchScalarGridSpec(
            num_scalar_prefetch=0,
            grid=(N,),
            in_specs=[
                pl.BlockSpec((1, H, Lin), lambda n: (n, 0, 0)),
                pl.BlockSpec((3 * Lin, 4 * L), full2),
                pl.BlockSpec((9, L), full2),
                pl.BlockSpec((L, L), full2),
                pl.BlockSpec((3, L), full2),
            ],
            out_specs=pl.BlockSpec((1, H, 4 * L), lambda n: (n, 0, 0)),
        ),
        compiler_params=pltpu.CompilerParams(
            dimension_semantics=("parallel",)),
    )(x, m_up, wdw_vec, pw_blk, shifts)

    # Un-pack phases: lane = ((qh*2+qw)*W + j)*Cout + d -> NCHW, oh=2i+qh, ow=2j+qw.
    y = out_packed.reshape(N, H, 2, 2, W, Cout)
    y = jnp.transpose(y, (0, 5, 1, 2, 4, 3))             # (N, Cout, H, qh, W, qw)
    return y.reshape(N, Cout, 2 * H, 2 * W)


# ---------------------------------------------------------------------------
# Deterministic synthetic parameters (inference-mode BN folded to scale/shift).
# ---------------------------------------------------------------------------
def init_params(key, cin, cout, scale_factor=2):
    k = scale_factor * 2
    ks = jax.random.split(key, 16)

    def bn_fold(kg, kb, km, kv, c):
        eps = 1e-5
        gamma = 1.0 + 0.1 * jax.random.normal(kg, (c,), jnp.float32)
        beta = 0.1 * jax.random.normal(kb, (c,), jnp.float32)
        mean = 0.1 * jax.random.normal(km, (c,), jnp.float32)
        var = 1.0 + 0.1 * jax.random.uniform(kv, (c,), jnp.float32)
        scale = gamma / jnp.sqrt(var + eps)
        shift = beta - mean * scale
        return scale.reshape(1, c), shift.reshape(1, c)

    p = {}
    p["w_tconv"] = 0.1 * jax.random.normal(ks[0], (cin, cout, k, k), jnp.float32)
    p["w_dw"] = 0.1 * jax.random.normal(ks[1], (3, 3, cout), jnp.float32)   # [i,j,c]
    p["w_pw"] = 0.1 * jax.random.normal(ks[2], (cout, cout), jnp.float32)   # [cin,cout]
    p["bn0_scale"], p["bn0_shift"] = bn_fold(ks[3], ks[4], ks[5], ks[6], cout)
    p["bn1_scale"], p["bn1_shift"] = bn_fold(ks[7], ks[8], ks[9], ks[10], cout)
    p["bn2_scale"], p["bn2_shift"] = bn_fold(ks[11], ks[12], ks[13], ks[14], cout)
    return p


# ---------------------------------------------------------------------------
# NumPy reference (direct ConvTranspose2d / depthwise / pointwise definition)
# ---------------------------------------------------------------------------
def reference_forward(x, params):
    x = np.asarray(x, np.float32)
    wt = np.asarray(params["w_tconv"])
    N, Cin, H, W = x.shape
    Cout = wt.shape[1]
    k, s, p = 4, 2, 1
    Ho, Wo = (H - 1) * s - 2 * p + k, (W - 1) * s - 2 * p + k

    ypad = np.zeros((N, Cout, Ho + 2 * p, Wo + 2 * p), np.float32)
    for kh in range(k):
        for kw in range(k):
            contrib = np.einsum("nchw,cd->ndhw", x, wt[:, :, kh, kw])
            ypad[:, :, kh:kh + (H - 1) * s + 1:s,
                 kw:kw + (W - 1) * s + 1:s] += contrib
    y = ypad[:, :, p:p + Ho, p:p + Wo]

    def bn_relu(z, scale, shift):
        sc = np.asarray(scale).reshape(1, -1, 1, 1)
        sh = np.asarray(shift).reshape(1, -1, 1, 1)
        return np.maximum(z * sc + sh, 0.0)

    y = bn_relu(y, params["bn0_scale"], params["bn0_shift"])

    w_dw = np.asarray(params["w_dw"])
    yp = np.pad(y, ((0, 0), (0, 0), (1, 1), (1, 1)))
    z = np.zeros_like(y)
    for i in range(3):
        for j in range(3):
            z += yp[:, :, i:i + Ho, j:j + Wo] * w_dw[i, j, :].reshape(1, -1, 1, 1)
    z = bn_relu(z, params["bn1_scale"], params["bn1_shift"])

    o = np.einsum("nchw,cd->ndhw", z, np.asarray(params["w_pw"]))
    return bn_relu(o, params["bn2_scale"], params["bn2_shift"])


if __name__ == "__main__":
    key = jax.random.PRNGKey(0)
    kx, kp = jax.random.split(key)

    N, Cin, H, W = 2, 8, 16, 16
    Cout = 8
    x = jax.random.normal(kx, (N, Cin, H, W), jnp.float32)
    params = init_params(kp, Cin, Cout)

    out = jax.jit(efficient_upsampling_forward)(x, params)
    out = jax.block_until_ready(out)

    assert out.shape == (N, Cout, 2 * H, 2 * W)
    ref = reference_forward(np.asarray(x), {k_: np.asarray(v) for k_, v in params.items()})
    # tolerance relaxed vs f32 reference because MXU operands are bf16
    np.testing.assert_allclose(np.asarray(out), ref, rtol=2e-2, atol=2e-2)

    print("KERNEL_OK")
</pallas_src>

<mosaic_0001>
module attributes {stable_mosaic.version = 11 : i64} {
  func.func @kernel(%arg0: i32, %arg1: memref<1x16x128xf32, #tpu.memory_space<vmem>>, %arg2: memref<384x512xbf16, #tpu.memory_space<vmem>>, %arg3: memref<9x128xf32, #tpu.memory_space<vmem>>, %arg4: memref<128x128xbf16, #tpu.memory_space<vmem>>, %arg5: memref<3x128xf32, #tpu.memory_space<vmem>>, %arg6: memref<1x16x512xf32, #tpu.memory_space<vmem>>) attributes {dimension_semantics = [#tpu.dimension_semantics<parallel>], iteration_bounds = array<i64: 2>, scalar_prefetch = 0 : i64, scratch_operands = 0 : i64, tpu.core_type = #tpu.core_type<tc>, window_params = [{transform_indices = @transform_0, window_bounds = array<i64: 1, 16, 128>}, {pipeline_mode = #tpu.pipeline_mode<synchronous>, transform_indices = @transform_1, window_bounds = array<i64: 384, 512>}, {pipeline_mode = #tpu.pipeline_mode<synchronous>, transform_indices = @transform_2, window_bounds = array<i64: 9, 128>}, {pipeline_mode = #tpu.pipeline_mode<synchronous>, transform_indices = @transform_3, window_bounds = array<i64: 128, 128>}, {pipeline_mode = #tpu.pipeline_mode<synchronous>, transform_indices = @transform_4, window_bounds = array<i64: 3, 128>}, {transform_indices = @transform_5, window_bounds = array<i64: 1, 16, 512>}]} {
    %c0 = arith.constant 0 : index
    %c0_0 = arith.constant 0 : index
    %c0_1 = arith.constant 0 : index
    %0 = vector.load %arg1[%c0, %c0_0, %c0_1] : memref<1x16x128xf32, #tpu.memory_space<vmem>>, vector<1x16x128xf32>
    %1 = vector.shape_cast %0 : vector<1x16x128xf32> to vector<16x128xf32>
    %cst = arith.constant 0.000000e+00 : f32
    %2 = vector.broadcast %cst : f32 to vector<1x128xf32>
    %3 = vector.extract_strided_slice %1 {offsets = [0, 0], sizes = [15, 128], strides = [1, 1]} : vector<16x128xf32> to vector<15x128xf32>
    %4 = tpu.concatenate %2, %3 in 0 : vector<1x128xf32>, vector<15x128xf32> -> vector<16x128xf32>
    %5 = vector.extract_strided_slice %1 {offsets = [1, 0], sizes = [15, 128], strides = [1, 1]} : vector<16x128xf32> to vector<15x128xf32>
    %6 = tpu.concatenate %5, %2 in 0 : vector<15x128xf32>, vector<1x128xf32> -> vector<16x128xf32>
    %7 = tpu.concatenate %4, %1, %6 in 1 : vector<16x128xf32>, vector<16x128xf32>, vector<16x128xf32> -> vector<16x384xf32>
    %8 = arith.truncf %7 : vector<16x384xf32> to vector<16x384xbf16>
    %c0_2 = arith.constant 0 : index
    %c0_3 = arith.constant 0 : index
    %9 = vector.load %arg2[%c0_2, %c0_3] : memref<384x512xbf16, #tpu.memory_space<vmem>>, vector<384x512xbf16>
    %cst_4 = arith.constant dense<0.000000e+00> : vector<16x512xf32>
    %10 = tpu.matmul %8, %9, %cst_4 {dimension_numbers = #tpu.dot_dimension_numbers<[1], [0], [0], [1], [0, 0, 1, 1], [], []>} : vector<16x384xbf16>, vector<384x512xbf16>, vector<16x512xf32> -> vector<16x512xf32>
    %c0_5 = arith.constant 0 : index
    %c0_6 = arith.constant 0 : index
    %11 = vector.load %arg5[%c0_5, %c0_6] : memref<3x128xf32, #tpu.memory_space<vmem>>, vector<3x128xf32>
    %12 = vector.extract_strided_slice %11 {offsets = [0, 0], sizes = [1, 128], strides = [1, 1]} : vector<3x128xf32> to vector<1x128xf32>
    %13 = vector.shape_cast %12 : vector<1x128xf32> to vector<1x128xf32>
    %14 = vector.broadcast %13 : vector<1x128xf32> to vector<16x128xf32>
    %15 = vector.extract_strided_slice %11 {offsets = [1, 0], sizes = [1, 128], strides = [1, 1]} : vector<3x128xf32> to vector<1x128xf32>
    %16 = vector.shape_cast %15 : vector<1x128xf32> to vector<1x128xf32>
    %17 = vector.broadcast %16 : vector<1x128xf32> to vector<16x128xf32>
    %18 = vector.extract_strided_slice %11 {offsets = [2, 0], sizes = [1, 128], strides = [1, 1]} : vector<3x128xf32> to vector<1x128xf32>
    %19 = vector.shape_cast %18 : vector<1x128xf32> to vector<1x128xf32>
    %20 = vector.broadcast %19 : vector<1x128xf32> to vector<16x128xf32>
    %21 = vector.extract_strided_slice %10 {offsets = [0, 0], sizes = [16, 128], strides = [1, 1]} : vector<16x512xf32> to vector<16x128xf32>
    %22 = arith.addf %21, %14 : vector<16x128xf32>
    %cst_7 = arith.constant 0.000000e+00 : f32
    %23 = vector.broadcast %cst_7 : f32 to vector<16x128xf32>
    %24 = arith.maximumf %22, %23 : vector<16x128xf32>
    %25 = vector.extract_strided_slice %10 {offsets = [0, 128], sizes = [16, 128], strides = [1, 1]} : vector<16x512xf32> to vector<16x128xf32>
    %26 = arith.addf %25, %14 : vector<16x128xf32>
    %cst_8 = arith.constant 0.000000e+00 : f32
    %27 = vector.broadcast %cst_8 : f32 to vector<16x128xf32>
    %28 = arith.maximumf %26, %27 : vector<16x128xf32>
    %29 = vector.extract_strided_slice %10 {offsets = [0, 256], sizes = [16, 128], strides = [1, 1]} : vector<16x512xf32> to vector<16x128xf32>
    %30 = arith.addf %29, %14 : vector<16x128xf32>
    %cst_9 = arith.constant 0.000000e+00 : f32
    %31 = vector.broadcast %cst_9 : f32 to vector<16x128xf32>
    %32 = arith.maximumf %30, %31 : vector<16x128xf32>
    %33 = vector.extract_strided_slice %10 {offsets = [0, 384], sizes = [16, 128], strides = [1, 1]} : vector<16x512xf32> to vector<16x128xf32>
    %34 = arith.addf %33, %14 : vector<16x128xf32>
    %cst_10 = arith.constant 0.000000e+00 : f32
    %35 = vector.broadcast %cst_10 : f32 to vector<16x128xf32>
    %36 = arith.maximumf %34, %35 : vector<16x128xf32>
    %c0_11 = arith.constant 0 : index
    %c0_12 = arith.constant 0 : index
    %37 = vector.load %arg3[%c0_11, %c0_12] : memref<9x128xf32, #tpu.memory_space<vmem>>, vector<9x128xf32>
    %38 = vector.extract_strided_slice %37 {offsets = [0, 0], sizes = [1, 128], strides = [1, 1]} : vector<9x128xf32> to vector<1x128xf32>
    %39 = vector.shape_cast %38 : vector<1x128xf32> to vector<1x128xf32>
    %40 = vector.broadcast %39 : vector<1x128xf32> to vector<16x128xf32>
    %41 = vector.extract_strided_slice %37 {offsets = [1, 0], sizes = [1, 128], strides = [1, 1]} : vector<9x128xf32> to vector<1x128xf32>
    %42 = vector.shape_cast %41 : vector<1x128xf32> to vector<1x128xf32>
    %43 = vector.broadcast %42 : vector<1x128xf32> to vector<16x128xf32>
    %44 = vector.extract_strided_slice %37 {offsets = [2, 0], sizes = [1, 128], strides = [1, 1]} : vector<9x128xf32> to vector<1x128xf32>
    %45 = vector.shape_cast %44 : vector<1x128xf32> to vector<1x128xf32>
    %46 = vector.broadcast %45 : vector<1x128xf32> to vector<16x128xf32>
    %47 = vector.extract_strided_slice %37 {offsets = [3, 0], sizes = [1, 128], strides = [1, 1]} : vector<9x128xf32> to vector<1x128xf32>
    %48 = vector.shape_cast %47 : vector<1x128xf32> to vector<1x128xf32>
    %49 = vector.broadcast %48 : vector<1x128xf32> to vector<16x128xf32>
    %50 = vector.extract_strided_slice %37 {offsets = [4, 0], sizes = [1, 128], strides = [1, 1]} : vector<9x128xf32> to vector<1x128xf32>
    %51 = vector.shape_cast %50 : vector<1x128xf32> to vector<1x128xf32>
    %52 = vector.broadcast %51 : vector<1x128xf32> to vector<16x128xf32>
    %53 = vector.extract_strided_slice %37 {offsets = [5, 0], sizes = [1, 128], strides = [1, 1]} : vector<9x128xf32> to vector<1x128xf32>
    %54 = vector.shape_cast %53 : vector<1x128xf32> to vector<1x128xf32>
    %55 = vector.broadcast %54 : vector<1x128xf32> to vector<16x128xf32>
    %56 = vector.extract_strided_slice %37 {offsets = [6, 0], sizes = [1, 128], strides = [1, 1]} : vector<9x128xf32> to vector<1x128xf32>
    %57 = vector.shape_cast %56 : vector<1x128xf32> to vector<1x128xf32>
    %58 = vector.broadcast %57 : vector<1x128xf32> to vector<16x128xf32>
    %59 = vector.extract_strided_slice %37 {offsets = [7, 0], sizes = [1, 128], strides = [1, 1]} : vector<9x128xf32> to vector<1x128xf32>
    %60 = vector.shape_cast %59 : vector<1x128xf32> to vector<1x128xf32>
    %61 = vector.broadcast %60 : vector<1x128xf32> to vector<16x128xf32>
    %62 = vector.extract_strided_slice %37 {offsets = [8, 0], sizes = [1, 128], strides = [1, 1]} : vector<9x128xf32> to vector<1x128xf32>
    %63 = vector.shape_cast %62 : vector<1x128xf32> to vector<1x128xf32>
    %64 = vector.broadcast %63 : vector<1x128xf32> to vector<16x128xf32>
    %c0_13 = arith.constant 0 : index
    %c0_14 = arith.constant 0 : index
    %65 = vector.load %arg4[%c0_13, %c0_14] : memref<128x128xbf16, #tpu.memory_space<vmem>>, vector<128x128xbf16>
    %cst_15 = arith.constant 0.000000e+00 : f32
    %66 = vector.broadcast %cst_15 : f32 to vector<1x128xf32>
    %cst_16 = arith.constant 0.000000e+00 : f32
    %67 = vector.broadcast %cst_16 : f32 to vector<16x8xf32>
    %cst_17 = arith.constant 0.000000e+00 : f32
    %68 = vector.broadcast %cst_17 : f32 to vector<16x128xf32>
    %69 = vector.extract_strided_slice %36 {offsets = [0, 0], sizes = [15, 128], strides = [1, 1]} : vector<16x128xf32> to vector<15x128xf32>
    %70 = tpu.concatenate %66, %69 in 0 : vector<1x128xf32>, vector<15x128xf32> -> vector<16x128xf32>
    %71 = vector.extract_strided_slice %70 {offsets = [0, 0], sizes = [16, 120], strides = [1, 1]} : vector<16x128xf32> to vector<16x120xf32>
    %72 = tpu.concatenate %67, %71 in 1 : vector<16x8xf32>, vector<16x120xf32> -> vector<16x128xf32>
    %73 = arith.mulf %72, %40 : vector<16x128xf32>
    %74 = arith.addf %68, %73 : vector<16x128xf32>
    %75 = vector.extract_strided_slice %32 {offsets = [0, 0], sizes = [15, 128], strides = [1, 1]} : vector<16x128xf32> to vector<15x128xf32>
    %76 = tpu.concatenate %66, %75 in 0 : vector<1x128xf32>, vector<15x128xf32> -> vector<16x128xf32>
    %77 = arith.mulf %76, %43 : vector<16x128xf32>
    %78 = arith.addf %74, %77 : vector<16x128xf32>
    %79 = arith.mulf %70, %46 : vector<16x128xf32>
    %80 = arith.addf %78, %79 : vector<16x128xf32>
    %81 = vector.extract_strided_slice %28 {offsets = [0, 0], sizes = [16, 120], strides = [1, 1]} : vector<16x128xf32> to vector<16x120xf32>
    %82 = tpu.concatenate %67, %81 in 1 : vector<16x8xf32>, vector<16x120xf32> -> vector<16x128xf32>
    %83 = arith.mulf %82, %49 : vector<16x128xf32>
    %84 = arith.addf %80, %83 : vector<16x128xf32>
    %85 = arith.mulf %24, %52 : vector<16x128xf32>
    %86 = arith.addf %84, %85 : vector<16x128xf32>
    %87 = arith.mulf %28, %55 : vector<16x128xf32>
    %88 = arith.addf %86, %87 : vector<16x128xf32>
    %89 = vector.extract_strided_slice %36 {offsets = [0, 0], sizes = [16, 120], strides = [1, 1]} : vector<16x128xf32> to vector<16x120xf32>
    %90 = tpu.concatenate %67, %89 in 1 : vector<16x8xf32>, vector<16x120xf32> -> vector<16x128xf32>
    %91 = arith.mulf %90, %58 : vector<16x128xf32>
    %92 = arith.addf %88, %91 : vector<16x128xf32>
    %93 = arith.mulf %32, %61 : vector<16x128xf32>
    %94 = arith.addf %92, %93 : vector<16x128xf32>
    %95 = arith.mulf %36, %64 : vector<16x128xf32>
    %96 = arith.addf %94, %95 : vector<16x128xf32>
    %97 = arith.addf %96, %17 : vector<16x128xf32>
    %cst_18 = arith.constant 0.000000e+00 : f32
    %98 = vector.broadcast %cst_18 : f32 to vector<16x128xf32>
    %99 = arith.maximumf %97, %98 : vector<16x128xf32>
    %100 = arith.truncf %99 : vector<16x128xf32> to vector<16x128xbf16>
    %cst_19 = arith.constant dense<0.000000e+00> : vector<16x128xf32>
    %101 = tpu.matmul %100, %65, %cst_19 {dimension_numbers = #tpu.dot_dimension_numbers<[1], [0], [0], [1], [0, 0, 1, 1], [], []>} : vector<16x128xbf16>, vector<128x128xbf16>, vector<16x128xf32> -> vector<16x128xf32>
    %102 = arith.addf %101, %20 : vector<16x128xf32>
    %cst_20 = arith.constant 0.000000e+00 : f32
    %103 = vector.broadcast %cst_20 : f32 to vector<16x128xf32>
    %104 = arith.maximumf %102, %103 : vector<16x128xf32>
    %c0_21 = arith.constant 0 : index
    %c0_22 = arith.constant 0 : index
    %c0_23 = arith.constant 0 : index
    %105 = vector.load %arg6[%c0_21, %c0_22, %c0_23] : memref<1x16x512xf32, #tpu.memory_space<vmem>>, vector<1x16x128xf32>
    %106 = vector.shape_cast %105 : vector<1x16x128xf32> to vector<16x128xf32>
    %107 = vector.shape_cast %104 : vector<16x128xf32> to vector<1x16x128xf32>
    tpu.vector_store %arg6[%c0_21, %c0_22, %c0_23], %107 {strides = array<i32>} : memref<1x16x512xf32, #tpu.memory_space<vmem>>, vector<1x16x128xf32>,
    %cst_24 = arith.constant 0.000000e+00 : f32
    %108 = vector.broadcast %cst_24 : f32 to vector<16x128xf32>
    %109 = arith.mulf %76, %40 : vector<16x128xf32>
    %110 = arith.addf %108, %109 : vector<16x128xf32>
    %111 = arith.mulf %70, %43 : vector<16x128xf32>
    %112 = arith.addf %110, %111 : vector<16x128xf32>
    %113 = vector.extract_strided_slice %76 {offsets = [0, 8], sizes = [16, 120], strides = [1, 1]} : vector<16x128xf32> to vector<16x120xf32>
    %114 = tpu.concatenate %113, %67 in 1 : vector<16x120xf32>, vector<16x8xf32> -> vector<16x128xf32>
    %115 = arith.mulf %114, %46 : vector<16x128xf32>
    %116 = arith.addf %112, %115 : vector<16x128xf32>
    %117 = arith.mulf %24, %49 : vector<16x128xf32>
    %118 = arith.addf %116, %117 : vector<16x128xf32>
    %119 = arith.mulf %28, %52 : vector<16x128xf32>
    %120 = arith.addf %118, %119 : vector<16x128xf32>
    %121 = vector.extract_strided_slice %24 {offsets = [0, 8], sizes = [16, 120], strides = [1, 1]} : vector<16x128xf32> to vector<16x120xf32>
    %122 = tpu.concatenate %121, %67 in 1 : vector<16x120xf32>, vector<16x8xf32> -> vector<16x128xf32>
    %123 = arith.mulf %122, %55 : vector<16x128xf32>
    %124 = arith.addf %120, %123 : vector<16x128xf32>
    %125 = arith.mulf %32, %58 : vector<16x128xf32>
    %126 = arith.addf %124, %125 : vector<16x128xf32>
    %127 = arith.mulf %36, %61 : vector<16x128xf32>
    %128 = arith.addf %126, %127 : vector<16x128xf32>
    %129 = vector.extract_strided_slice %32 {offsets = [0, 8], sizes = [16, 120], strides = [1, 1]} : vector<16x128xf32> to vector<16x120xf32>
    %130 = tpu.concatenate %129, %67 in 1 : vector<16x120xf32>, vector<16x8xf32> -> vector<16x128xf32>
    %131 = arith.mulf %130, %64 : vector<16x128xf32>
    %132 = arith.addf %128, %131 : vector<16x128xf32>
    %133 = arith.addf %132, %17 : vector<16x128xf32>
    %cst_25 = arith.constant 0.000000e+00 : f32
    %134 = vector.broadcast %cst_25 : f32 to vector<16x128xf32>
    %135 = arith.maximumf %133, %134 : vector<16x128xf32>
    %136 = arith.truncf %135 : vector<16x128xf32> to vector<16x128xbf16>
    %cst_26 = arith.constant dense<0.000000e+00> : vector<16x128xf32>
    %137 = tpu.matmul %136, %65, %cst_26 {dimension_numbers = #tpu.dot_dimension_numbers<[1], [0], [0], [1], [0, 0, 1, 1], [], []>} : vector<16x128xbf16>, vector<128x128xbf16>, vector<16x128xf32> -> vector<16x128xf32>
    %138 = arith.addf %137, %20 : vector<16x128xf32>
    %cst_27 = arith.constant 0.000000e+00 : f32
    %139 = vector.broadcast %cst_27 : f32 to vector<16x128xf32>
    %140 = arith.maximumf %138, %139 : vector<16x128xf32>
    %c0_28 = arith.constant 0 : index
    %c0_29 = arith.constant 0 : index
    %c128 = arith.constant 128 : index
    %141 = vector.load %arg6[%c0_28, %c0_29, %c128] : memref<1x16x512xf32, #tpu.memory_space<vmem>>, vector<1x16x128xf32>
    %142 = vector.shape_cast %141 : vector<1x16x128xf32> to vector<16x128xf32>
    %143 = vector.shape_cast %140 : vector<16x128xf32> to vector<1x16x128xf32>
    tpu.vector_store %arg6[%c0_28, %c0_29, %c128], %143 {strides = array<i32>} : memref<1x16x512xf32, #tpu.memory_space<vmem>>, vector<1x16x128xf32>,
    %cst_30 = arith.constant 0.000000e+00 : f32
    %144 = vector.broadcast %cst_30 : f32 to vector<16x128xf32>
    %145 = arith.mulf %82, %40 : vector<16x128xf32>
    %146 = arith.addf %144, %145 : vector<16x128xf32>
    %147 = arith.mulf %24, %43 : vector<16x128xf32>
    %148 = arith.addf %146, %147 : vector<16x128xf32>
    %149 = arith.mulf %28, %46 : vector<16x128xf32>
    %150 = arith.addf %148, %149 : vector<16x128xf32>
    %151 = arith.mulf %90, %49 : vector<16x128xf32>
    %152 = arith.addf %150, %151 : vector<16x128xf32>
    %153 = arith.mulf %32, %52 : vector<16x128xf32>
    %154 = arith.addf %152, %153 : vector<16x128xf32>
    %155 = arith.mulf %36, %55 : vector<16x128xf32>
    %156 = arith.addf %154, %155 : vector<16x128xf32>
    %157 = vector.extract_strided_slice %28 {offsets = [1, 0], sizes = [15, 128], strides = [1, 1]} : vector<16x128xf32> to vector<15x128xf32>
    %158 = tpu.concatenate %157, %66 in 0 : vector<15x128xf32>, vector<1x128xf32> -> vector<16x128xf32>
    %159 = vector.extract_strided_slice %158 {offsets = [0, 0], sizes = [16, 120], strides = [1, 1]} : vector<16x128xf32> to vector<16x120xf32>
    %160 = tpu.concatenate %67, %159 in 1 : vector<16x8xf32>, vector<16x120xf32> -> vector<16x128xf32>
    %161 = arith.mulf %160, %58 : vector<16x128xf32>
    %162 = arith.addf %156, %161 : vector<16x128xf32>
    %163 = vector.extract_strided_slice %24 {offsets = [1, 0], sizes = [15, 128], strides = [1, 1]} : vector<16x128xf32> to vector<15x128xf32>
    %164 = tpu.concatenate %163, %66 in 0 : vector<15x128xf32>, vector<1x128xf32> -> vector<16x128xf32>
    %165 = arith.mulf %164, %61 : vector<16x128xf32>
    %166 = arith.addf %162, %165 : vector<16x128xf32>
    %167 = arith.mulf %158, %64 : vector<16x128xf32>
    %168 = arith.addf %166, %167 : vector<16x128xf32>
    %169 = arith.addf %168, %17 : vector<16x128xf32>
    %cst_31 = arith.constant 0.000000e+00 : f32
    %170 = vector.broadcast %cst_31 : f32 to vector<16x128xf32>
    %171 = arith.maximumf %169, %170 : vector<16x128xf32>
    %172 = arith.truncf %171 : vector<16x128xf32> to vector<16x128xbf16>
    %cst_32 = arith.constant dense<0.000000e+00> : vector<16x128xf32>
    %173 = tpu.matmul %172, %65, %cst_32 {dimension_numbers = #tpu.dot_dimension_numbers<[1], [0], [0], [1], [0, 0, 1, 1], [], []>} : vector<16x128xbf16>, vector<128x128xbf16>, vector<16x128xf32> -> vector<16x128xf32>
    %174 = arith.addf %173, %20 : vector<16x128xf32>
    %cst_33 = arith.constant 0.000000e+00 : f32
    %175 = vector.broadcast %cst_33 : f32 to vector<16x128xf32>
    %176 = arith.maximumf %174, %175 : vector<16x128xf32>
    %c0_34 = arith.constant 0 : index
    %c0_35 = arith.constant 0 : index
    %c256 = arith.constant 256 : index
    %177 = vector.load %arg6[%c0_34, %c0_35, %c256] : memref<1x16x512xf32, #tpu.memory_space<vmem>>, vector<1x16x128xf32>
    %178 = vector.shape_cast %177 : vector<1x16x128xf32> to vector<16x128xf32>
    %179 = vector.shape_cast %176 : vector<16x128xf32> to vector<1x16x128xf32>
    tpu.vector_store %arg6[%c0_34, %c0_35, %c256], %179 {strides = array<i32>} : memref<1x16x512xf32, #tpu.memory_space<vmem>>, vector<1x16x128xf32>,
    %cst_36 = arith.constant 0.000000e+00 : f32
    %180 = vector.broadcast %cst_36 : f32 to vector<16x128xf32>
    %181 = arith.mulf %24, %40 : vector<16x128xf32>
    %182 = arith.addf %180, %181 : vector<16x128xf32>
    %183 = arith.mulf %28, %43 : vector<16x128xf32>
    %184 = arith.addf %182, %183 : vector<16x128xf32>
    %185 = arith.mulf %122, %46 : vector<16x128xf32>
    %186 = arith.addf %184, %185 : vector<16x128xf32>
    %187 = arith.mulf %32, %49 : vector<16x128xf32>
    %188 = arith.addf %186, %187 : vector<16x128xf32>
    %189 = arith.mulf %36, %52 : vector<16x128xf32>
    %190 = arith.addf %188, %189 : vector<16x128xf32>
    %191 = arith.mulf %130, %55 : vector<16x128xf32>
    %192 = arith.addf %190, %191 : vector<16x128xf32>
    %193 = arith.mulf %164, %58 : vector<16x128xf32>
    %194 = arith.addf %192, %193 : vector<16x128xf32>
    %195 = arith.mulf %158, %61 : vector<16x128xf32>
    %196 = arith.addf %194, %195 : vector<16x128xf32>
    %197 = vector.extract_strided_slice %164 {offsets = [0, 8], sizes = [16, 120], strides = [1, 1]} : vector<16x128xf32> to vector<16x120xf32>
    %198 = tpu.concatenate %197, %67 in 1 : vector<16x120xf32>, vector<16x8xf32> -> vector<16x128xf32>
    %199 = arith.mulf %198, %64 : vector<16x128xf32>
    %200 = arith.addf %196, %199 : vector<16x128xf32>
    %201 = arith.addf %200, %17 : vector<16x128xf32>
    %cst_37 = arith.constant 0.000000e+00 : f32
    %202 = vector.broadcast %cst_37 : f32 to vector<16x128xf32>
    %203 = arith.maximumf %201, %202 : vector<16x128xf32>
    %204 = arith.truncf %203 : vector<16x128xf32> to vector<16x128xbf16>
    %cst_38 = arith.constant dense<0.000000e+00> : vector<16x128xf32>
    %205 = tpu.matmul %204, %65, %cst_38 {dimension_numbers = #tpu.dot_dimension_numbers<[1], [0], [0], [1], [0, 0, 1, 1], [], []>} : vector<16x128xbf16>, vector<128x128xbf16>, vector<16x128xf32> -> vector<16x128xf32>
    %206 = arith.addf %205, %20 : vector<16x128xf32>
    %cst_39 = arith.constant 0.000000e+00 : f32
    %207 = vector.broadcast %cst_39 : f32 to vector<16x128xf32>
    %208 = arith.maximumf %206, %207 : vector<16x128xf32>
    %c0_40 = arith.constant 0 : index
    %c0_41 = arith.constant 0 : index
    %c384 = arith.constant 384 : index
    %209 = vector.load %arg6[%c0_40, %c0_41, %c384] : memref<1x16x512xf32, #tpu.memory_space<vmem>>, vector<1x16x128xf32>
    %210 = vector.shape_cast %209 : vector<1x16x128xf32> to vector<16x128xf32>
    %211 = vector.shape_cast %208 : vector<16x128xf32> to vector<1x16x128xf32>
    tpu.vector_store %arg6[%c0_40, %c0_41, %c384], %211 {strides = array<i32>} : memref<1x16x512xf32, #tpu.memory_space<vmem>>, vector<1x16x128xf32>,
    return
  }
  func.func @transform_0(%arg0: i32) -> (i32, i32, i32) {
    %c0_i32 = arith.constant 0 : i32
    %c0_i32_0 = arith.constant 0 : i32
    %c0_i32_1 = arith.constant 0 : i32
    return %arg0, %c0_i32, %c0_i32_0 : i32, i32, i32
  }
  func.func @transform_1(%arg0: i32) -> (i32, i32) {
    %c0_i32 = arith.constant 0 : i32
    %c0_i32_0 = arith.constant 0 : i32
    %c0_i32_1 = arith.constant 0 : i32
    return %c0_i32, %c0_i32_0 : i32, i32
  }
  func.func @transform_2(%arg0: i32) -> (i32, i32) {
    %c0_i32 = arith.constant 0 : i32
    %c0_i32_0 = arith.constant 0 : i32
    %c0_i32_1 = arith.constant 0 : i32
    return %c0_i32, %c0_i32_0 : i32, i32
  }
  func.func @transform_3(%arg0: i32) -> (i32, i32) {
    %c0_i32 = arith.constant 0 : i32
    %c0_i32_0 = arith.constant 0 : i32
    %c0_i32_1 = arith.constant 0 : i32
    return %c0_i32, %c0_i32_0 : i32, i32
  }
  func.func @transform_4(%arg0: i32) -> (i32, i32) {
    %c0_i32 = arith.constant 0 : i32
    %c0_i32_0 = arith.constant 0 : i32
    %c0_i32_1 = arith.constant 0 : i32
    return %c0_i32, %c0_i32_0 : i32, i32
  }
  func.func @transform_5(%arg0: i32) -> (i32, i32, i32) {
    %c0_i32 = arith.constant 0 : i32
    %c0_i32_0 = arith.constant 0 : i32
    %c0_i32_1 = arith.constant 0 : i32
    return %arg0, %c0_i32, %c0_i32_0 : i32, i32, i32
  }
}

</mosaic_0001>

<llo_original>
// kernel: tile.22
$region0: #{tile.22}
  %s0 = inlined_call_operand.vmem [shape: f32[9,16,1,1,8], index: 0, kind: input, shape index: {}]
  %s1 = inlined_call_operand.vmem [shape: f32[9,128], index: 1, kind: output, shape index: {}]
  %s2 = smov 3
  %v3 = vld [vmem:[%s0] ss:$16 sm:%s2]
  %s4 = smov 12
  %v5 = vld [vmem:[%s0] ss:$16 sm:%s4]
  %vm6 = vcmask 1043458
  %v7 = vsel %vm6, %v5, %v3
  %s8 = smov 48
  %v9 = vld [vmem:[%s0] ss:$16 sm:%s8]
  %vm10 = vcmask 1045508
  %v11 = vsel %vm10, %v9, %v7
  %s12 = smov 192
  %v13 = vld [vmem:[%s0] ss:$16 sm:%s12]
  %vm14 = vcmask 1047558
  %v15 = vsel %vm14, %v13, %v11
  %vm16 = vcmask 64512
  %17 = vst.msk [vmem:[%s1] sm:$0xff] %vm16, %v15
  %s18 = scalar_lea.vmem %s0, 128
  %v19 = vld [vmem:[%s18] sm:$0x1]
  %vm20 = vcmask 64512
  %s21 = scalar_lea.vmem %s1, 8
  %22 = vst.msk [vmem:[%s21] sm:$0x1] %vm20, %v19
  %s23 = scalar_lea.vmem %s0, 15
  %s24 = smov 3
  %v25 = vld [vmem:[%s23] ss:$16 sm:%s24]
  %s26 = scalar_lea.vmem %s0, 15
  %s27 = smov 12
  %v28 = vld [vmem:[%s26] ss:$16 sm:%s27]
  %vm29 = vcmask 1043458
  %v30 = vsel %vm29, %v28, %v25
  %s31 = scalar_lea.vmem %s0, 15
  %s32 = smov 48
  %v33 = vld [vmem:[%s31] ss:$16 sm:%s32]
  %vm34 = vcmask 1045508
  %v35 = vsel %vm34, %v33, %v30
  %s36 = scalar_lea.vmem %s0, 15
  %s37 = smov 192
  %v38 = vld [vmem:[%s36] ss:$16 sm:%s37]
  %vm39 = vcmask 1047558
  %v40 = vsel %vm39, %v38, %v35
  %41 = vrot.lane.b32.xlu0 %v40, 120
  %v42 = vpop.permute.xlu0 %41
  %vm43 = vcmask 1048512
  %44 = vst.msk [vmem:[%s1] sm:$0xff] %vm43, %v42
  %s45 = scalar_lea.vmem %s0, 143
  %v46 = vld [vmem:[%s45] sm:$0x1]
  %47 = vrot.lane.b32.xlu0 %v46, 120
  %v48 = vpop.permute.xlu0 %47
  %vm49 = vcmask 1048512
  %s50 = scalar_lea.vmem %s1, 8
  %51 = vst.msk [vmem:[%s50] sm:$0x1] %vm49, %v48
  %s52 = scalar_lea.vmem %s0, 14
  %s53 = smov 3
  %v54 = vld [vmem:[%s52] ss:$16 sm:%s53]
  %s55 = scalar_lea.vmem %s0, 14
  %s56 = smov 12
  %v57 = vld [vmem:[%s55] ss:$16 sm:%s56]
  %vm58 = vcmask 1043458
  %v59 = vsel %vm58, %v57, %v54
  %s60 = scalar_lea.vmem %s0, 14
  %s61 = smov 48
  %v62 = vld [vmem:[%s60] ss:$16 sm:%s61]
  %vm63 = vcmask 1045508
  %v64 = vsel %vm63, %v62, %v59
  %s65 = scalar_lea.vmem %s0, 14
  %s66 = smov 192
  %v67 = vld [vmem:[%s65] ss:$16 sm:%s66]
  %vm68 = vcmask 1047558
  %v69 = vsel %vm68, %v67, %v64
  %70 = vrot.lane.b32.xlu0 %v69, 112
  %v71 = vpop.permute.xlu0 %70
  %vm72 = vcmask 982912
  %73 = vst.msk [vmem:[%s1] sm:$0xff] %vm72, %v71
  %s74 = scalar_lea.vmem %s0, 142
  %v75 = vld [vmem:[%s74] sm:$0x1]
  %76 = vrot.lane.b32.xlu0 %v75, 112
  %v77 = vpop.permute.xlu0 %76
  %vm78 = vcmask 982912
  %s79 = scalar_lea.vmem %s1, 8
  %80 = vst.msk [vmem:[%s79] sm:$0x1] %vm78, %v77
  %s81 = scalar_lea.vmem %s0, 13
  %s82 = smov 3
  %v83 = vld [vmem:[%s81] ss:$16 sm:%s82]
  %s84 = scalar_lea.vmem %s0, 13
  %s85 = smov 12
  %v86 = vld [vmem:[%s84] ss:$16 sm:%s85]
  %vm87 = vcmask 1043458
  %v88 = vsel %vm87, %v86, %v83
  %s89 = scalar_lea.vmem %s0, 13
  %s90 = smov 48
  %v91 = vld [vmem:[%s89] ss:$16 sm:%s90]
  %vm92 = vcmask 1045508
  %v93 = vsel %vm92, %v91, %v88
  %s94 = scalar_lea.vmem %s0, 13
  %s95 = smov 192
  %v96 = vld [vmem:[%s94] ss:$16 sm:%s95]
  %vm97 = vcmask 1047558
  %v98 = vsel %vm97, %v96, %v93
  %99 = vrot.lane.b32.xlu0 %v98, 104
  %v100 = vpop.permute.xlu0 %99
  %vm101 = vcmask 917312
  %102 = vst.msk [vmem:[%s1] sm:$0xff] %vm101, %v100
  %s103 = scalar_lea.vmem %s0, 141
  %v104 = vld [vmem:[%s103] sm:$0x1]
  %105 = vrot.lane.b32.xlu0 %v104, 104
  %v106 = vpop.permute.xlu0 %105
  %vm107 = vcmask 917312
  %s108 = scalar_lea.vmem %s1, 8
  %109 = vst.msk [vmem:[%s108] sm:$0x1] %vm107, %v106
  %s110 = scalar_lea.vmem %s0, 12
  %s111 = smov 3
  %v112 = vld [vmem:[%s110] ss:$16 sm:%s111]
  %s113 = scalar_lea.vmem %s0, 12
  %s114 = smov 12
  %v115 = vld [vmem:[%s113] ss:$16 sm:%s114]
  %vm116 = vcmask 1043458
  %v117 = vsel %vm116, %v115, %v112
  %s118 = scalar_lea.vmem %s0, 12
  %s119 = smov 48
  %v120 = vld [vmem:[%s118] ss:$16 sm:%s119]
  %vm121 = vcmask 1045508
  %v122 = vsel %vm121, %v120, %v117
  %s123 = scalar_lea.vmem %s0, 12
  %s124 = smov 192
  %v125 = vld [vmem:[%s123] ss:$16 sm:%s124]
  %vm126 = vcmask 1047558
  %v127 = vsel %vm126, %v125, %v122
  %128 = vrot.lane.b32.xlu0 %v127, 96
  %v129 = vpop.permute.xlu0 %128
  %vm130 = vcmask 851712
  %131 = vst.msk [vmem:[%s1] sm:$0xff] %vm130, %v129
  %s132 = scalar_lea.vmem %s0, 140
  %v133 = vld [vmem:[%s132] sm:$0x1]
  %134 = vrot.lane.b32.xlu0 %v133, 96
  %v135 = vpop.permute.xlu0 %134
  %vm136 = vcmask 851712
  %s137 = scalar_lea.vmem %s1, 8
  %138 = vst.msk [vmem:[%s137] sm:$0x1] %vm136, %v135
  %s139 = scalar_lea.vmem %s0, 11
  %s140 = smov 3
  %v141 = vld [vmem:[%s139] ss:$16 sm:%s140]
  %s142 = scalar_lea.vmem %s0, 11
  %s143 = smov 12
  %v144 = vld [vmem:[%s142] ss:$16 sm:%s143]
  %vm145 = vcmask 1043458
  %v146 = vsel %vm145, %v144, %v141
  %s147 = scalar_lea.vmem %s0, 11
  %s148 = smov 48
  %v149 = vld [vmem:[%s147] ss:$16 sm:%s148]
  %vm150 = vcmask 1045508
  %v151 = vsel %vm150, %v149, %v146
  %s152 = scalar_lea.vmem %s0, 11
  %s153 = smov 192
  %v154 = vld [vmem:[%s152] ss:$16 sm:%s153]
  %vm155 = vcmask 1047558
  %v156 = vsel %vm155, %v154, %v151
  %157 = vrot.lane.b32.xlu0 %v156, 88
  %v158 = vpop.permute.xlu0 %157
  %vm159 = vcmask 786112
  %160 = vst.msk [vmem:[%s1] sm:$0xff] %vm159, %v158
  %s161 = scalar_lea.vmem %s0, 139
  %v162 = vld [vmem:[%s161] sm:$0x1]
  %163 = vrot.lane.b32.xlu0 %v162, 88
  %v164 = vpop.permute.xlu0 %163
  %vm165 = vcmask 786112
  %s166 = scalar_lea.vmem %s1, 8
  %167 = vst.msk [vmem:[%s166] sm:$0x1] %vm165, %v164
  %s168 = scalar_lea.vmem %s0, 10
  %s169 = smov 3
  %v170 = vld [vmem:[%s168] ss:$16 sm:%s169]
  %s171 = scalar_lea.vmem %s0, 10
  %s172 = smov 12
  %v173 = vld [vmem:[%s171] ss:$16 sm:%s172]
  %vm174 = vcmask 1043458
  %v175 = vsel %vm174, %v173, %v170
  %s176 = scalar_lea.vmem %s0, 10
  %s177 = smov 48
  %v178 = vld [vmem:[%s176] ss:$16 sm:%s177]
  %vm179 = vcmask 1045508
  %v180 = vsel %vm179, %v178, %v175
  %s181 = scalar_lea.vmem %s0, 10
  %s182 = smov 192
  %v183 = vld [vmem:[%s181] ss:$16 sm:%s182]
  %vm184 = vcmask 1047558
  %v185 = vsel %vm184, %v183, %v180
  %186 = vrot.lane.b32.xlu0 %v185, 80
  %v187 = vpop.permute.xlu0 %186
  %vm188 = vcmask 720512
  %189 = vst.msk [vmem:[%s1] sm:$0xff] %vm188, %v187
  %s190 = scalar_lea.vmem %s0, 138
  %v191 = vld [vmem:[%s190] sm:$0x1]
  %192 = vrot.lane.b32.xlu0 %v191, 80
  %v193 = vpop.permute.xlu0 %192
  %vm194 = vcmask 720512
  %s195 = scalar_lea.vmem %s1, 8
  %196 = vst.msk [vmem:[%s195] sm:$0x1] %vm194, %v193
  %s197 = scalar_lea.vmem %s0, 9
  %s198 = smov 3
  %v199 = vld [vmem:[%s197] ss:$16 sm:%s198]
  %s200 = scalar_lea.vmem %s0, 9
  %s201 = smov 12
  %v202 = vld [vmem:[%s200] ss:$16 sm:%s201]
  %vm203 = vcmask 1043458
  %v204 = vsel %vm203, %v202, %v199
  %s205 = scalar_lea.vmem %s0, 9
  %s206 = smov 48
  %v207 = vld [vmem:[%s205] ss:$16 sm:%s206]
  %vm208 = vcmask 1045508
  %v209 = vsel %vm208, %v207, %v204
  %s210 = scalar_lea.vmem %s0, 9
  %s211 = smov 192
  %v212 = vld [vmem:[%s210] ss:$16 sm:%s211]
  %vm213 = vcmask 1047558
  %v214 = vsel %vm213, %v212, %v209
  %215 = vrot.lane.b32.xlu0 %v214, 72
  %v216 = vpop.permute.xlu0 %215
  %vm217 = vcmask 654912
  %218 = vst.msk [vmem:[%s1] sm:$0xff] %vm217, %v216
  %s219 = scalar_lea.vmem %s0, 137
  %v220 = vld [vmem:[%s219] sm:$0x1]
  %221 = vrot.lane.b32.xlu0 %v220, 72
  %v222 = vpop.permute.xlu0 %221
  %vm223 = vcmask 654912
  %s224 = scalar_lea.vmem %s1, 8
  %225 = vst.msk [vmem:[%s224] sm:$0x1] %vm223, %v222
  %s226 = scalar_lea.vmem %s0, 8
  %s227 = smov 3
  %v228 = vld [vmem:[%s226] ss:$16 sm:%s227]
  %s229 = scalar_lea.vmem %s0, 8
  %s230 = smov 12
  %v231 = vld [vmem:[%s229] ss:$16 sm:%s230]
  %vm232 = vcmask 1043458
  %v233 = vsel %vm232, %v231, %v228
  %s234 = scalar_lea.vmem %s0, 8
  %s235 = smov 48
  %v236 = vld [vmem:[%s234] ss:$16 sm:%s235]
  %vm237 = vcmask 1045508
  %v238 = vsel %vm237, %v236, %v233
  %s239 = scalar_lea.vmem %s0, 8
  %s240 = smov 192
  %v241 = vld [vmem:[%s239] ss:$16 sm:%s240]
  %vm242 = vcmask 1047558
  %v243 = vsel %vm242, %v241, %v238
  %244 = vrot.lane.b32.xlu0 %v243, 64
  %v245 = vpop.permute.xlu0 %244
  %vm246 = vcmask 589312
  %247 = vst.msk [vmem:[%s1] sm:$0xff] %vm246, %v245
  %s248 = scalar_lea.vmem %s0, 136
  %v249 = vld [vmem:[%s248] sm:$0x1]
  %250 = vrot.lane.b32.xlu0 %v249, 64
  %v251 = vpop.permute.xlu0 %250
  %vm252 = vcmask 589312
  %s253 = scalar_lea.vmem %s1, 8
  %254 = vst.msk [vmem:[%s253] sm:$0x1] %vm252, %v251
  %s255 = scalar_lea.vmem %s0, 7
  %s256 = smov 3
  %v257 = vld [vmem:[%s255] ss:$16 sm:%s256]
  %s258 = scalar_lea.vmem %s0, 7
  %s259 = smov 12
  %v260 = vld [vmem:[%s258] ss:$16 sm:%s259]
  %vm261 = vcmask 1043458
  %v262 = vsel %vm261, %v260, %v257
  %s263 = scalar_lea.vmem %s0, 7
  %s264 = smov 48
  %v265 = vld [vmem:[%s263] ss:$16 sm:%s264]
  %vm266 = vcmask 1045508
  %v267 = vsel %vm266, %v265, %v262
  %s268 = scalar_lea.vmem %s0, 7
  %s269 = smov 192
  %v270 = vld [vmem:[%s268] ss:$16 sm:%s269]
  %vm271 = vcmask 1047558
  %v272 = vsel %vm271, %v270, %v267
  %273 = vrot.lane.b32.xlu0 %v272, 56
  %v274 = vpop.permute.xlu0 %273
  %vm275 = vcmask 523712
  %276 = vst.msk [vmem:[%s1] sm:$0xff] %vm275, %v274
  %s277 = scalar_lea.vmem %s0, 135
  %v278 = vld [vmem:[%s277] sm:$0x1]
  %279 = vrot.lane.b32.xlu0 %v278, 56
  %v280 = vpop.permute.xlu0 %279
  %vm281 = vcmask 523712
  %s282 = scalar_lea.vmem %s1, 8
  %283 = vst.msk [vmem:[%s282] sm:$0x1] %vm281, %v280
  %s284 = scalar_lea.vmem %s0, 6
  %s285 = smov 3
  %v286 = vld [vmem:[%s284] ss:$16 sm:%s285]
  %s287 = scalar_lea.vmem %s0, 6
  %s288 = smov 12
  %v289 = vld [vmem:[%s287] ss:$16 sm:%s288]
  %vm290 = vcmask 1043458
  %v291 = vsel %vm290, %v289, %v286
  %s292 = scalar_lea.vmem %s0, 6
  %s293 = smov 48
  %v294 = vld [vmem:[%s292] ss:$16 sm:%s293]
  %vm295 = vcmask 1045508
  %v296 = vsel %vm295, %v294, %v291
  %s297 = scalar_lea.vmem %s0, 6
  %s298 = smov 192
  %v299 = vld [vmem:[%s297] ss:$16 sm:%s298]
  %vm300 = vcmask 1047558
  %v301 = vsel %vm300, %v299, %v296
  %302 = vrot.lane.b32.xlu0 %v301, 48
  %v303 = vpop.permute.xlu0 %302
  %vm304 = vcmask 458112
  %305 = vst.msk [vmem:[%s1] sm:$0xff] %vm304, %v303
  %s306 = scalar_lea.vmem %s0, 134
  %v307 = vld [vmem:[%s306] sm:$0x1]
  %308 = vrot.lane.b32.xlu0 %v307, 48
  %v309 = vpop.permute.xlu0 %308
  %vm310 = vcmask 458112
  %s311 = scalar_lea.vmem %s1, 8
  %312 = vst.msk [vmem:[%s311] sm:$0x1] %vm310, %v309
  %s313 = scalar_lea.vmem %s0, 5
  %s314 = smov 3
  %v315 = vld [vmem:[%s313] ss:$16 sm:%s314]
  %s316 = scalar_lea.vmem %s0, 5
  %s317 = smov 12
  %v318 = vld [vmem:[%s316] ss:$16 sm:%s317]
  %vm319 = vcmask 1043458
  %v320 = vsel %vm319, %v318, %v315
  %s321 = scalar_lea.vmem %s0, 5
  %s322 = smov 48
  %v323 = vld [vmem:[%s321] ss:$16 sm:%s322]
  %vm324 = vcmask 1045508
  %v325 = vsel %vm324, %v323, %v320
  %s326 = scalar_lea.vmem %s0, 5
  %s327 = smov 192
  %v328 = vld [vmem:[%s326] ss:$16 sm:%s327]
  %vm329 = vcmask 1047558
  %v330 = vsel %vm329, %v328, %v325
  %331 = vrot.lane.b32.xlu0 %v330, 40
  %v332 = vpop.permute.xlu0 %331
  %vm333 = vcmask 392512
  %334 = vst.msk [vmem:[%s1] sm:$0xff] %vm333, %v332
  %s335 = scalar_lea.vmem %s0, 133
  %v336 = vld [vmem:[%s335] sm:$0x1]
  %337 = vrot.lane.b32.xlu0 %v336, 40
  %v338 = vpop.permute.xlu0 %337
  %vm339 = vcmask 392512
  %s340 = scalar_lea.vmem %s1, 8
  %341 = vst.msk [vmem:[%s340] sm:$0x1] %vm339, %v338
  %s342 = scalar_lea.vmem %s0, 4
  %s343 = smov 3
  %v344 = vld [vmem:[%s342] ss:$16 sm:%s343]
  %s345 = scalar_lea.vmem %s0, 4
  %s346 = smov 12
  %v347 = vld [vmem:[%s345] ss:$16 sm:%s346]
  %vm348 = vcmask 1043458
  %v349 = vsel %vm348, %v347, %v344
  %s350 = scalar_lea.vmem %s0, 4
  %s351 = smov 48
  %v352 = vld [vmem:[%s350] ss:$16 sm:%s351]
  %vm353 = vcmask 1045508
  %v354 = vsel %vm353, %v352, %v349
  %s355 = scalar_lea.vmem %s0, 4
  %s356 = smov 192
  %v357 = vld [vmem:[%s355] ss:$16 sm:%s356]
  %vm358 = vcmask 1047558
  %v359 = vsel %vm358, %v357, %v354
  %360 = vrot.lane.b32.xlu0 %v359, 32
  %v361 = vpop.permute.xlu0 %360
  %vm362 = vcmask 326912
  %363 = vst.msk [vmem:[%s1] sm:$0xff] %vm362, %v361
  %s364 = scalar_lea.vmem %s0, 132
  %v365 = vld [vmem:[%s364] sm:$0x1]
  %366 = vrot.lane.b32.xlu0 %v365, 32
  %v367 = vpop.permute.xlu0 %366
  %vm368 = vcmask 326912
  %s369 = scalar_lea.vmem %s1, 8
  %370 = vst.msk [vmem:[%s369] sm:$0x1] %vm368, %v367
  %s371 = scalar_lea.vmem %s0, 3
  %s372 = smov 3
  %v373 = vld [vmem:[%s371] ss:$16 sm:%s372]
  %s374 = scalar_lea.vmem %s0, 3
  %s375 = smov 12
  %v376 = vld [vmem:[%s374] ss:$16 sm:%s375]
  %vm377 = vcmask 1043458
  %v378 = vsel %vm377, %v376, %v373
  %s379 = scalar_lea.vmem %s0, 3
  %s380 = smov 48
  %v381 = vld [vmem:[%s379] ss:$16 sm:%s380]
  %vm382 = vcmask 1045508
  %v383 = vsel %vm382, %v381, %v378
  %s384 = scalar_lea.vmem %s0, 3
  %s385 = smov 192
  %v386 = vld [vmem:[%s384] ss:$16 sm:%s385]
  %vm387 = vcmask 1047558
  %v388 = vsel %vm387, %v386, %v383
  %389 = vrot.lane.b32.xlu0 %v388, 24
  %v390 = vpop.permute.xlu0 %389
  %vm391 = vcmask 261312
  %392 = vst.msk [vmem:[%s1] sm:$0xff] %vm391, %v390
  %s393 = scalar_lea.vmem %s0, 131
  %v394 = vld [vmem:[%s393] sm:$0x1]
  %395 = vrot.lane.b32.xlu0 %v394, 24
  %v396 = vpop.permute.xlu0 %395
  %vm397 = vcmask 261312
  %s398 = scalar_lea.vmem %s1, 8
  %399 = vst.msk [vmem:[%s398] sm:$0x1] %vm397, %v396
  %s400 = scalar_lea.vmem %s0, 2
  %s401 = smov 3
  %v402 = vld [vmem:[%s400] ss:$16 sm:%s401]
  %s403 = scalar_lea.vmem %s0, 2
  %s404 = smov 12
  %v405 = vld [vmem:[%s403] ss:$16 sm:%s404]
  %vm406 = vcmask 1043458
  %v407 = vsel %vm406, %v405, %v402
  %s408 = scalar_lea.vmem %s0, 2
  %s409 = smov 48
  %v410 = vld [vmem:[%s408] ss:$16 sm:%s409]
  %vm411 = vcmask 1045508
  %v412 = vsel %vm411, %v410, %v407
  %s413 = scalar_lea.vmem %s0, 2
  %s414 = smov 192
  %v415 = vld [vmem:[%s413] ss:$16 sm:%s414]
  %vm416 = vcmask 1047558
  %v417 = vsel %vm416, %v415, %v412
  %418 = vrot.lane.b32.xlu0 %v417, 16
  %v419 = vpop.permute.xlu0 %418
  %vm420 = vcmask 195712
  %421 = vst.msk [vmem:[%s1] sm:$0xff] %vm420, %v419
  %s422 = scalar_lea.vmem %s0, 130
  %v423 = vld [vmem:[%s422] sm:$0x1]
  %424 = vrot.lane.b32.xlu0 %v423, 16
  %v425 = vpop.permute.xlu0 %424
  %vm426 = vcmask 195712
  %s427 = scalar_lea.vmem %s1, 8
  %428 = vst.msk [vmem:[%s427] sm:$0x1] %vm426, %v425
  %s429 = scalar_lea.vmem %s0, 1
  %s430 = smov 3
  %v431 = vld [vmem:[%s429] ss:$16 sm:%s430]
  %s432 = scalar_lea.vmem %s0, 1
  %s433 = smov 12
  %v434 = vld [vmem:[%s432] ss:$16 sm:%s433]
  %vm435 = vcmask 1043458
  %v436 = vsel %vm435, %v434, %v431
  %s437 = scalar_lea.vmem %s0, 1
  %s438 = smov 48
  %v439 = vld [vmem:[%s437] ss:$16 sm:%s438]
  %vm440 = vcmask 1045508
  %v441 = vsel %vm440, %v439, %v436
  %s442 = scalar_lea.vmem %s0, 1
  %s443 = smov 192
  %v444 = vld [vmem:[%s442] ss:$16 sm:%s443]
  %vm445 = vcmask 1047558
  %v446 = vsel %vm445, %v444, %v441
  %447 = vrot.lane.b32.xlu0 %v446, 8
  %v448 = vpop.permute.xlu0 %447
  %vm449 = vcmask 130112
  %450 = vst.msk [vmem:[%s1] sm:$0xff] %vm449, %v448
  %s451 = scalar_lea.vmem %s0, 129
  %v452 = vld [vmem:[%s451] sm:$0x1]
  %453 = vrot.lane.b32.xlu0 %v452, 8
  %v454 = vpop.permute.xlu0 %453
  %vm455 = vcmask 130112
  %s456 = scalar_lea.vmem %s1, 8
  %457 = vst.msk [vmem:[%s456] sm:$0x1] %vm455, %v454

// kernel: tile.26
$region0: #{tile.26}
  #allocation0 [shape = 's32[1]{0}', space=sflag, size = 0x4, scoped, tag = 'scoped memory for tile.26']
  %s0 = inlined_call_operand.vmem [shape: f32[8], index: 0, kind: input, shape index: {}]
  %s1 = inlined_call_operand.vmem [shape: f32[16,1,1,8], index: 1, kind: output, shape index: {}]
  // Predicated region
  $region2: #{tile.26} parent=0 // pred_check
    _
  $region3: #{tile.26} parent=0 // pred_check_branch
    %3 = sbr.rel (0) target = $region5
  $region4: #{tile.26} parent=0 // pred_region
    _
  $region5: #{tile.26} parent=0 // pred_fallthru
    _
  %v4 = vld [vmem:[%s0] ss:$0 sm:$0xff]
  %5 = vst [vmem:[%s1] sm:$0xff] %v4
  %s6 = scalar_lea.vmem %s1, 8
  %7 = vst [vmem:[%s6] sm:$0xff] %v4

// kernel: tile.35
$region0: #{tile.35}
  %s0 = inlined_call_operand.vmem [shape: f32[16,1,1,8], index: 0, kind: input, shape index: {}]
  %s1 = inlined_call_operand.vmem [shape: f32[1,128], index: 1, kind: output, shape index: {}]
  $region1: #{tile.35} parent=0
    #allocation0 [shape = 'u8[4096]{0}', space=vmem, size = 0x1000, scoped, tag = 'scoped mem for output reshape']
    %v2 = vld [vmem:[%s0] sm:$0x1]
    %vm3 = vcmask 64512
    %4 = vst.msk [vmem:[#allocation0] sm:$0x1] %vm3, %v2
    %s5 = scalar_lea.vmem %s0, 15
    %v6 = vld [vmem:[%s5] sm:$0x1]
    %7 = vrot.lane.b32.xlu0 %v6, 120
    %v8 = vpop.permute.xlu0 %7
    %vm9 = vcmask 1048512
    %10 = vst.msk [vmem:[#allocation0] sm:$0x1] %vm9, %v8
    %s11 = scalar_lea.vmem %s0, 14
    %v12 = vld [vmem:[%s11] sm:$0x1]
    %13 = vrot.lane.b32.xlu0 %v12, 112
    %v14 = vpop.permute.xlu0 %13
    %vm15 = vcmask 982912
    %16 = vst.msk [vmem:[#allocation0] sm:$0x1] %vm15, %v14
    %s17 = scalar_lea.vmem %s0, 13
    %v18 = vld [vmem:[%s17] sm:$0x1]
    %19 = vrot.lane.b32.xlu0 %v18, 104
    %v20 = vpop.permute.xlu0 %19
    %vm21 = vcmask 917312
    %22 = vst.msk [vmem:[#allocation0] sm:$0x1] %vm21, %v20
    %s23 = scalar_lea.vmem %s0, 12
    %v24 = vld [vmem:[%s23] sm:$0x1]
    %25 = vrot.lane.b32.xlu0 %v24, 96
    %v26 = vpop.permute.xlu0 %25
    %vm27 = vcmask 851712
    %28 = vst.msk [vmem:[#allocation0] sm:$0x1] %vm27, %v26
    %s29 = scalar_lea.vmem %s0, 11
    %v30 = vld [vmem:[%s29] sm:$0x1]
    %31 = vrot.lane.b32.xlu0 %v30, 88
    %v32 = vpop.permute.xlu0 %31
    %vm33 = vcmask 786112
    %34 = vst.msk [vmem:[#allocation0] sm:$0x1] %vm33, %v32
    %s35 = scalar_lea.vmem %s0, 10
    %v36 = vld [vmem:[%s35] sm:$0x1]
    %37 = vrot.lane.b32.xlu0 %v36, 80
    %v38 = vpop.permute.xlu0 %37
    %vm39 = vcmask 720512
    %40 = vst.msk [vmem:[#allocation0] sm:$0x1] %vm39, %v38
    %s41 = scalar_lea.vmem %s0, 9
    %v42 = vld [vmem:[%s41] sm:$0x1]
    %43 = vrot.lane.b32.xlu0 %v42, 72
    %v44 = vpop.permute.xlu0 %43
    %vm45 = vcmask 654912
    %46 = vst.msk [vmem:[#allocation0] sm:$0x1] %vm45, %v44
    %s47 = scalar_lea.vmem %s0, 8
    %v48 = vld [vmem:[%s47] sm:$0x1]
    %49 = vrot.lane.b32.xlu0 %v48, 64
    %v50 = vpop.permute.xlu0 %49
    %vm51 = vcmask 589312
    %52 = vst.msk [vmem:[#allocation0] sm:$0x1] %vm51, %v50
    %s53 = scalar_lea.vmem %s0, 7
    %v54 = vld [vmem:[%s53] sm:$0x1]
    %55 = vrot.lane.b32.xlu0 %v54, 56
    %v56 = vpop.permute.xlu0 %55
    %vm57 = vcmask 523712
    %58 = vst.msk [vmem:[#allocation0] sm:$0x1] %vm57, %v56
    %s59 = scalar_lea.vmem %s0, 6
    %v60 = vld [vmem:[%s59] sm:$0x1]
    %61 = vrot.lane.b32.xlu0 %v60, 48
    %v62 = vpop.permute.xlu0 %61
    %vm63 = vcmask 458112
    %64 = vst.msk [vmem:[#allocation0] sm:$0x1] %vm63, %v62
    %s65 = scalar_lea.vmem %s0, 5
    %v66 = vld [vmem:[%s65] sm:$0x1]
    %67 = vrot.lane.b32.xlu0 %v66, 40
    %v68 = vpop.permute.xlu0 %67
    %vm69 = vcmask 392512
    %70 = vst.msk [vmem:[#allocation0] sm:$0x1] %vm69, %v68
    %s71 = scalar_lea.vmem %s0, 4
    %v72 = vld [vmem:[%s71] sm:$0x1]
    %73 = vrot.lane.b32.xlu0 %v72, 32
    %v74 = vpop.permute.xlu0 %73
    %vm75 = vcmask 326912
    %76 = vst.msk [vmem:[#allocation0] sm:$0x1] %vm75, %v74
    %s77 = scalar_lea.vmem %s0, 3
    %v78 = vld [vmem:[%s77] sm:$0x1]
    %79 = vrot.lane.b32.xlu0 %v78, 24
    %v80 = vpop.permute.xlu0 %79
    %vm81 = vcmask 261312
    %82 = vst.msk [vmem:[#allocation0] sm:$0x1] %vm81, %v80
    %s83 = scalar_lea.vmem %s0, 2
    %v84 = vld [vmem:[%s83] sm:$0x1]
    %85 = vrot.lane.b32.xlu0 %v84, 16
    %v86 = vpop.permute.xlu0 %85
    %vm87 = vcmask 195712
    %88 = vst.msk [vmem:[#allocation0] sm:$0x1] %vm87, %v86
    %s89 = scalar_lea.vmem %s0, 1
    %v90 = vld [vmem:[%s89] sm:$0x1]
    %91 = vrot.lane.b32.xlu0 %v90, 8
    %v92 = vpop.permute.xlu0 %91
    %vm93 = vcmask 130112
    %94 = vst.msk [vmem:[#allocation0] sm:$0x1] %vm93, %v92
    %s96 = sshllo.u32 0, 1
    %v98 = vld [vmem:[#allocation0] sm:%s96]
    %s99 = sshllo.u32 0, 1
    %100 = vst [vmem:[%s1] sm:%s99] %v98

// kernel: efficient_upsampling_forward.1
$region0: #{efficient_upsampling_forward.1}
  #allocation0 [shape = 'u32[]', space=smem, size = 0x4, offset = 0x4, fixed_abs, tag = 'smem constant byte address 0x4 - core index']
  #allocation1 [shape = 'u32[144,128]{1,0:T(1,128)}', space=vmem, size = 0x12000, scoped, tag = 'internal scratch']
  %s0 = inlined_call_operand.vmem [shape: f32[2,16,128], index: 0, kind: input, shape index: {}]
  %s1 = inlined_call_operand.vmem [shape: bf16[384,512], index: 1, kind: input, shape index: {}]
  %s2 = inlined_call_operand.vmem [shape: f32[9,128], index: 2, kind: input, shape index: {}]
  %s3 = inlined_call_operand.vmem [shape: bf16[128,128], index: 3, kind: input, shape index: {}]
  %s4 = inlined_call_operand.vmem [shape: f32[3,128], index: 4, kind: input, shape index: {}]
  %s5 = inlined_call_operand.vmem [shape: f32[2,16,512], index: 5, kind: output, shape index: {}]
  %s6 = sld [smem:[#allocation0]]
  $region53: #{efficient_upsampling_forward.1} parent=0
    _
  %s8 = ssub.s32 1, %s6
  %s9 = scalar_select 0, %s8, %s6
  loop: start=0, step=1, limit=4
  $region2: #{efficient_upsampling_forward.1} parent=0 // loop_pre_header
    _
  $region3: #{efficient_upsampling_forward.1} parent=0 // loop_header
    %s11 = sphi 0, %s15
    %p12 = scmp.ge.s32.totalorder %s11, 4
    %s21 = sphi 0, %s23
    %s24 = sphi 0, %s21
    %s25 = sphi 0, %s24
    %s41 = sphi 0, %s25
    %s45 = sphi 0, %s45
    %s47 = sphi 0, %s45
    %s48 = sphi 0, %s47
    %s62 = sphi 0, %s48
    %s66 = sphi 0, %s66
    %s68 = sphi 0, %s66
    %s69 = sphi 0, %s68
    %s83 = sphi 0, %s69
    %s87 = sphi 0, %s87
    %s89 = sphi 0, %s87
    %s90 = sphi 0, %s89
    %s104 = sphi 0, %s90
    %s108 = sphi 0, %s108
    %s110 = sphi 0, %s108
    %s111 = sphi 0, %s110
    %s125 = sphi 0, %s111
    %s131 = sphi 0, %s133
    %s134 = sphi 0, %s131
    %s135 = sphi 0, %s134
    %s151 = sphi 0, %s135
  $region4: #{efficient_upsampling_forward.1} parent=0 // loop_header_branch
    %14 = sbr.rel (%p12) target = $region8
  $region5: #{efficient_upsampling_forward.1} parent=0 // loop_body
    %s16 = ssub.s32 %s11, 1
    %s17 = ssub.s32 %s11, 2
    %s18 = sadd.s32 %s11, 1
    %s19 = ssub.s32 %s11, %s18
    %p20 = scmp.eq.s32.totalorder %s19, 0
    %s22 = sadd.s32 %s21, 1
    %s23 = scalar_select %p20, %s21, %s22
    %p26 = pneg %p20
    %p27 = scmp.eq.s32.totalorder %s11, 1
    %p28 = por %p26, %p27
    %p29 = scmp.ne.s32.totalorder %s21, %s24
    %p30 = scmp.eq.s32.totalorder %s11, 0
    %p31 = por %p29, %p30
    %p32 = scmp.ne.s32.totalorder %s21, %s24
    %p33 = scmp.eq.s32.totalorder %s16, 1
    %p34 = por %p32, %p33
    %p35 = scmp.ne.s32.totalorder %s24, %s25
    %p36 = scmp.eq.s32.totalorder %s16, 0
    %p37 = por %p35, %p36
    %p38 = scmp.ne.s32.totalorder %s24, %s25
    %p39 = scmp.eq.s32.totalorder %s17, 1
    %p40 = por %p38, %p39
    %p42 = scmp.ne.s32.totalorder %s25, %s41
    %p43 = scmp.eq.s32.totalorder %s17, 0
    %p44 = por %p42, %p43
    %s46 = sadd.s32 %s45, 1
    %p49 = scmp.eq.s32.totalorder %s11, 1
    %p50 = scmp.ne.s32.totalorder %s45, %s47
    %p51 = scmp.eq.s32.totalorder %s11, 0
    %p52 = por %p50, %p51
    %p53 = scmp.ne.s32.totalorder %s45, %s47
    %p54 = scmp.eq.s32.totalorder %s16, 1
    %p55 = por %p53, %p54
    %p56 = scmp.ne.s32.totalorder %s47, %s48
    %p57 = scmp.eq.s32.totalorder %s16, 0
    %p58 = por %p56, %p57
    %p59 = scmp.ne.s32.totalorder %s47, %s48
    %p60 = scmp.eq.s32.totalorder %s17, 1
    %p61 = por %p59, %p60
    %p63 = scmp.ne.s32.totalorder %s48, %s62
    %p64 = scmp.eq.s32.totalorder %s17, 0
    %p65 = por %p63, %p64
    %s67 = sadd.s32 %s66, 1
    %p70 = scmp.eq.s32.totalorder %s11, 1
    %p71 = scmp.ne.s32.totalorder %s66, %s68
    %p72 = scmp.eq.s32.totalorder %s11, 0
    %p73 = por %p71, %p72
    %p74 = scmp.ne.s32.totalorder %s66, %s68
    %p75 = scmp.eq.s32.totalorder %s16, 1
    %p76 = por %p74, %p75
    %p77 = scmp.ne.s32.totalorder %s68, %s69
    %p78 = scmp.eq.s32.totalorder %s16, 0
    %p79 = por %p77, %p78
    %p80 = scmp.ne.s32.totalorder %s68, %s69
    %p81 = scmp.eq.s32.totalorder %s17, 1
    %p82 = por %p80, %p81
    %p84 = scmp.ne.s32.totalorder %s69, %s83
    %p85 = scmp.eq.s32.totalorder %s17, 0
    %p86 = por %p84, %p85
    %s88 = sadd.s32 %s87, 1
    %p91 = scmp.eq.s32.totalorder %s11, 1
    %p92 = scmp.ne.s32.totalorder %s87, %s89
    %p93 = scmp.eq.s32.totalorder %s11, 0
    %p94 = por %p92, %p93
    %p95 = scmp.ne.s32.totalorder %s87, %s89
    %p96 = scmp.eq.s32.totalorder %s16, 1
    %p97 = por %p95, %p96
    %p98 = scmp.ne.s32.totalorder %s89, %s90
    %p99 = scmp.eq.s32.totalorder %s16, 0
    %p100 = por %p98, %p99
    %p101 = scmp.ne.s32.totalorder %s89, %s90
    %p102 = scmp.eq.s32.totalorder %s17, 1
    %p103 = por %p101, %p102
    %p105 = scmp.ne.s32.totalorder %s90, %s104
    %p106 = scmp.eq.s32.totalorder %s17, 0
    %p107 = por %p105, %p106
    %s109 = sadd.s32 %s108, 1
    %p112 = scmp.eq.s32.totalorder %s11, 1
    %p113 = scmp.ne.s32.totalorder %s108, %s110
    %p114 = scmp.eq.s32.totalorder %s11, 0
    %p115 = por %p113, %p114
    %p116 = scmp.ne.s32.totalorder %s108, %s110
    %p117 = scmp.eq.s32.totalorder %s16, 1
    %p118 = por %p116, %p117
    %p119 = scmp.ne.s32.totalorder %s110, %s111
    %p120 = scmp.eq.s32.totalorder %s16, 0
    %p121 = por %p119, %p120
    %p122 = scmp.ne.s32.totalorder %s110, %s111
    %p123 = scmp.eq.s32.totalorder %s17, 1
    %p124 = por %p122, %p123
    %p126 = scmp.ne.s32.totalorder %s111, %s125
    %p127 = scmp.eq.s32.totalorder %s17, 0
    %p128 = por %p126, %p127
    %s129 = ssub.s32 %s11, %s18
    %p130 = scmp.eq.s32.totalorder %s129, 0
    %s132 = sadd.s32 %s131, 1
    %s133 = scalar_select %p130, %s131, %s132
    %p136 = pneg %p130
    %p137 = scmp.eq.s32.totalorder %s11, 1
    %p138 = por %p136, %p137
    %p139 = scmp.ne.s32.totalorder %s131, %s134
    %p140 = scmp.eq.s32.totalorder %s11, 0
    %p141 = por %p139, %p140
    %p142 = scmp.ne.s32.totalorder %s131, %s134
    %p143 = scmp.eq.s32.totalorder %s16, 1
    %p144 = por %p142, %p143
    %p145 = scmp.ne.s32.totalorder %s134, %s135
    %p146 = scmp.eq.s32.totalorder %s16, 0
    %p147 = por %p145, %p146
    %p148 = scmp.ne.s32.totalorder %s134, %s135
    %p149 = scmp.eq.s32.totalorder %s17, 1
    %p150 = por %p148, %p149
    %p152 = scmp.ne.s32.totalorder %s135, %s151
    %p153 = scmp.eq.s32.totalorder %s17, 0
    %p154 = por %p152, %p153
    %p155 = scmp.le.s32.totalorder 1, %s11
    %p156 = scmp.lt.s32.totalorder %s11, 3
    %p157 = pnand %p155, %p156
    %p158 = pneg %p157
    // Predicated region
    $region9: #{efficient_upsampling_forward.1} parent=5 // pred_check
      _
    $region10: #{efficient_upsampling_forward.1} parent=5 // pred_check_branch
      %160 = sbr.rel (%p157) target = $region12
    $region11: #{efficient_upsampling_forward.1} parent=5 // pred_region
      %s161 = ssub.s32 %s11, 1
      // Predicated region
      $region13: #{efficient_upsampling_forward.1} parent=11 // pred_check
        %p162 = pneg %p58
      $region14: #{efficient_upsampling_forward.1} parent=11 // pred_check_branch
        %164 = sbr.rel (%p162) target = $region16
      $region15: #{efficient_upsampling_forward.1} parent=11 // pred_region
        _
      $region16: #{efficient_upsampling_forward.1} parent=11 // pred_fallthru
        _
      // Predicated region
      $region17: #{efficient_upsampling_forward.1} parent=11 // pred_check
        %p165 = pneg %p79
      $region18: #{efficient_upsampling_forward.1} parent=11 // pred_check_branch
        %167 = sbr.rel (%p165) target = $region20
      $region19: #{efficient_upsampling_forward.1} parent=11 // pred_region
        _
      $region20: #{efficient_upsampling_forward.1} parent=11 // pred_fallthru
        _
      // Predicated region
      $region21: #{efficient_upsampling_forward.1} parent=11 // pred_check
        %p168 = pneg %p100
      $region22: #{efficient_upsampling_forward.1} parent=11 // pred_check_branch
        %170 = sbr.rel (%p168) target = $region24
      $region23: #{efficient_upsampling_forward.1} parent=11 // pred_region
        _
      $region24: #{efficient_upsampling_forward.1} parent=11 // pred_fallthru
        _
      // Predicated region
      $region25: #{efficient_upsampling_forward.1} parent=11 // pred_check
        %p171 = pneg %p121
      $region26: #{efficient_upsampling_forward.1} parent=11 // pred_check_branch
        %173 = sbr.rel (%p171) target = $region28
      $region27: #{efficient_upsampling_forward.1} parent=11 // pred_region
        _
      $region28: #{efficient_upsampling_forward.1} parent=11 // pred_fallthru
        _
    $region12: #{efficient_upsampling_forward.1} parent=5 // pred_fallthru
      _
    %p174 = scmp.lt.s32.totalorder %s11, 2
    // Predicated region
    $region29: #{efficient_upsampling_forward.1} parent=5 // pred_check
      %p175 = pneg %p174
    $region30: #{efficient_upsampling_forward.1} parent=5 // pred_check_branch
      %177 = sbr.rel (%p175) target = $region32
    $region31: #{efficient_upsampling_forward.1} parent=5 // pred_region
      // Predicated region
      $region33: #{efficient_upsampling_forward.1} parent=31 // pred_check
        %p178 = pneg %p31
      $region34: #{efficient_upsampling_forward.1} parent=31 // pred_check_branch
        %180 = sbr.rel (%p178) target = $region36
      $region35: #{efficient_upsampling_forward.1} parent=31 // pred_region
        %p181 = scmp.lt.s32.totalorder %s11, 1
        %s182 = scalar_select %p181, %s11, 1
        %s183 = smul.addr %s182, 2
        %s184 = smul.addr %s183, 8
        %s185 = scalar_lea.vmem %s0, %s184
      $region36: #{efficient_upsampling_forward.1} parent=31 // pred_fallthru
        _
    $region32: #{efficient_upsampling_forward.1} parent=5 // pred_fallthru
      _
    %p186 = scmp.le.s32.totalorder 1, %s11
    %p187 = scmp.lt.s32.totalorder %s11, 3
    %p188 = pnand %p186, %p187
    %p189 = pneg %p188
    // Predicated region
    $region37: #{efficient_upsampling_forward.1} parent=5 // pred_check
      _
    $region38: #{efficient_upsampling_forward.1} parent=5 // pred_check_branch
      %191 = sbr.rel (%p188) target = $region40
    $region39: #{efficient_upsampling_forward.1} parent=5 // pred_region
      %s192 = ssub.s32 %s11, 1
      %p193 = scmp.lt.s32.totalorder %s16, 1
      %s194 = scalar_select %p193, %s16, 1
      %s195 = smul.addr %s194, 2
      %s196 = smul.addr %s195, 8
      %s197 = scalar_lea.vmem %s0, %s196
      %p198 = pneg %p37
      %p199 = pneg %p34
      %p200 = pneg %p58
      %p201 = pneg %p55
      %p202 = pneg %p79
      %p203 = pneg %p76
      %p204 = pneg %p100
      %p205 = pneg %p97
      %p206 = pneg %p121
      %p207 = pneg %p118
      %p208 = pneg %p147
      %p209 = pneg %p144
      %p210 = scmp.lt.s32.totalorder %s16, 1
      %s211 = scalar_select %p210, %s16, 1
      %s212 = smul.addr %s211, 8
      %s213 = smul.addr %s212, 8
      %s214 = scalar_lea.vmem %s5, %s213
      %p215 = scmp.lt.s32.totalorder %s16, 1
      %s216 = scalar_select %p215, %s16, 1
      %s217 = smul.addr %s216, 2
      %s218 = smul.addr %s217, 8
      %s219 = scalar_lea.vmem %s0, %s218
      %p220 = scmp.lt.s32.totalorder %s16, 1
      %s221 = scalar_select %p220, %s16, 1
      %s222 = smul.addr %s221, 8
      %s223 = smul.addr %s222, 8
      %s224 = scalar_lea.vmem %s5, %s223
      %v226 = vld [vmem:[%s219] sm:$0xff]
      %v227 = vld [vmem:[%s219 + $0x8] sm:$0xff]
      %vm230 = vcmask 1040384
      %v231 = vrot.slane %v226, 7
      %v232 = vrot.slane %v227, 7
      %v233 = vsel %vm230, %v231, %v232
      %v236 = vsel %vm230, 0.0, %v231
      %vm237 = vcmask 1046528
      %v238 = vrot.slane %v226, 1
      %v239 = vrot.slane %v227, 1
      %v240 = vsel %vm237, %v238, %v239
      %v243 = vsel %vm237, %v239, 0.0
      %v244 = vpack.c.bf16 %v233, %v236
      %v245 = vpack.c.bf16 %v227, %v226
      %v246 = vpack.c.bf16 %v243, %v240
      %v247 = vld [vmem:[%s1] sm:$0xff]
      %v248 = vld [vmem:[%s1 + $0x8] sm:$0xff]
      %v249 = vld [vmem:[%s1 + $0x10] sm:$0xff]
      %v250 = vld [vmem:[%s1 + $0x18] sm:$0xff]
      %v251 = vld [vmem:[%s1 + $0x20] sm:$0xff]
      %v252 = vld [vmem:[%s1 + $0x28] sm:$0xff]
      %v253 = vld [vmem:[%s1 + $0x30] sm:$0xff]
      %v254 = vld [vmem:[%s1 + $0x38] sm:$0xff]
      %v255 = vld [vmem:[%s1 + $0x40] sm:$0xff]
      %v256 = vld [vmem:[%s1 + $0x48] sm:$0xff]
      %v257 = vld [vmem:[%s1 + $0x50] sm:$0xff]
      %v258 = vld [vmem:[%s1 + $0x58] sm:$0xff]
      %v259 = vld [vmem:[%s1 + $0x60] sm:$0xff]
      %v260 = vld [vmem:[%s1 + $0x68] sm:$0xff]
      %v261 = vld [vmem:[%s1 + $0x70] sm:$0xff]
      %v262 = vld [vmem:[%s1 + $0x78] sm:$0xff]
      %v263 = vld [vmem:[%s1 + $0x80] sm:$0xff]
      %v264 = vld [vmem:[%s1 + $0x88] sm:$0xff]
      %v265 = vld [vmem:[%s1 + $0x90] sm:$0xff]
      %v266 = vld [vmem:[%s1 + $0x98] sm:$0xff]
      %v267 = vld [vmem:[%s1 + $0xa0] sm:$0xff]
      %v268 = vld [vmem:[%s1 + $0xa8] sm:$0xff]
      %v269 = vld [vmem:[%s1 + $0xb0] sm:$0xff]
      %v270 = vld [vmem:[%s1 + $0xb8] sm:$0xff]
      %v271 = vld [vmem:[%s1 + $0xc0] sm:$0xff]
      %v272 = vld [vmem:[%s1 + $0xc8] sm:$0xff]
      %v273 = vld [vmem:[%s1 + $0xd0] sm:$0xff]
      %v274 = vld [vmem:[%s1 + $0xd8] sm:$0xff]
      %v275 = vld [vmem:[%s1 + $0xe0] sm:$0xff]
      %v276 = vld [vmem:[%s1 + $0xe8] sm:$0xff]
      %v277 = vld [vmem:[%s1 + $0xf0] sm:$0xff]
      %v278 = vld [vmem:[%s1 + $0xf8] sm:$0xff]
      %v279 = vld [vmem:[%s1 + $0x100] sm:$0xff]
      %v280 = vld [vmem:[%s1 + $0x108] sm:$0xff]
      %v281 = vld [vmem:[%s1 + $0x110] sm:$0xff]
      %v282 = vld [vmem:[%s1 + $0x118] sm:$0xff]
      %v283 = vld [vmem:[%s1 + $0x120] sm:$0xff]
      %v284 = vld [vmem:[%s1 + $0x128] sm:$0xff]
      %v285 = vld [vmem:[%s1 + $0x130] sm:$0xff]
      %v286 = vld [vmem:[%s1 + $0x138] sm:$0xff]
      %v287 = vld [vmem:[%s1 + $0x140] sm:$0xff]
      %v288 = vld [vmem:[%s1 + $0x148] sm:$0xff]
      %v289 = vld [vmem:[%s1 + $0x150] sm:$0xff]
      %v290 = vld [vmem:[%s1 + $0x158] sm:$0xff]
      %v291 = vld [vmem:[%s1 + $0x160] sm:$0xff]
      %v292 = vld [vmem:[%s1 + $0x168] sm:$0xff]
      %v293 = vld [vmem:[%s1 + $0x170] sm:$0xff]
      %v294 = vld [vmem:[%s1 + $0x178] sm:$0xff]
      %v295 = vld [vmem:[%s1 + $0x180] sm:$0xff]
      %v296 = vld [vmem:[%s1 + $0x188] sm:$0xff]
      %v297 = vld [vmem:[%s1 + $0x190] sm:$0xff]
      %v298 = vld [vmem:[%s1 + $0x198] sm:$0xff]
      %v299 = vld [vmem:[%s1 + $0x1a0] sm:$0xff]
      %v300 = vld [vmem:[%s1 + $0x1a8] sm:$0xff]
      %v301 = vld [vmem:[%s1 + $0x1b0] sm:$0xff]
      %v302 = vld [vmem:[%s1 + $0x1b8] sm:$0xff]
      %v303 = vld [vmem:[%s1 + $0x1c0] sm:$0xff]
      %v304 = vld [vmem:[%s1 + $0x1c8] sm:$0xff]
      %v305 = vld [vmem:[%s1 + $0x1d0] sm:$0xff]
      %v306 = vld [vmem:[%s1 + $0x1d8] sm:$0xff]
      %v307 = vld [vmem:[%s1 + $0x1e0] sm:$0xff]
      %v308 = vld [vmem:[%s1 + $0x1e8] sm:$0xff]
      %v309 = vld [vmem:[%s1 + $0x1f0] sm:$0xff]
      %v310 = vld [vmem:[%s1 + $0x1f8] sm:$0xff]
      %v311 = vld [vmem:[%s1 + $0x200] sm:$0xff]
      %v312 = vld [vmem:[%s1 + $0x208] sm:$0xff]
      %v313 = vld [vmem:[%s1 + $0x210] sm:$0xff]
      %v314 = vld [vmem:[%s1 + $0x218] sm:$0xff]
      %v315 = vld [vmem:[%s1 + $0x220] sm:$0xff]
      %v316 = vld [vmem:[%s1 + $0x228] sm:$0xff]
      %v317 = vld [vmem:[%s1 + $0x230] sm:$0xff]
      %v318 = vld [vmem:[%s1 + $0x238] sm:$0xff]
      %v319 = vld [vmem:[%s1 + $0x240] sm:$0xff]
      %v320 = vld [vmem:[%s1 + $0x248] sm:$0xff]
      %v321 = vld [vmem:[%s1 + $0x250] sm:$0xff]
      %v322 = vld [vmem:[%s1 + $0x258] sm:$0xff]
      %v323 = vld [vmem:[%s1 + $0x260] sm:$0xff]
      %v324 = vld [vmem:[%s1 + $0x268] sm:$0xff]
      %v325 = vld [vmem:[%s1 + $0x270] sm:$0xff]
      %v326 = vld [vmem:[%s1 + $0x278] sm:$0xff]
      %v327 = vld [vmem:[%s1 + $0x280] sm:$0xff]
      %v328 = vld [vmem:[%s1 + $0x288] sm:$0xff]
      %v329 = vld [vmem:[%s1 + $0x290] sm:$0xff]
      %v330 = vld [vmem:[%s1 + $0x298] sm:$0xff]
      %v331 = vld [vmem:[%s1 + $0x2a0] sm:$0xff]
      %v332 = vld [vmem:[%s1 + $0x2a8] sm:$0xff]
      %v333 = vld [vmem:[%s1 + $0x2b0] sm:$0xff]
      %v334 = vld [vmem:[%s1 + $0x2b8] sm:$0xff]
      %v335 = vld [vmem:[%s1 + $0x2c0] sm:$0xff]
      %v336 = vld [vmem:[%s1 + $0x2c8] sm:$0xff]
      %v337 = vld [vmem:[%s1 + $0x2d0] sm:$0xff]
      %v338 = vld [vmem:[%s1 + $0x2d8] sm:$0xff]
      %v339 = vld [vmem:[%s1 + $0x2e0] sm:$0xff]
      %v340 = vld [vmem:[%s1 + $0x2e8] sm:$0xff]
      %v341 = vld [vmem:[%s1 + $0x2f0] sm:$0xff]
      %v342 = vld [vmem:[%s1 + $0x2f8] sm:$0xff]
      %v439 = vunpack.c.l.b16 %v247
      %v440 = vunpack.c.h.b16 %v247
      %v441 = vunpack.c.l.b16 %v248
      %v442 = vunpack.c.h.b16 %v248
      %v443 = vunpack.c.l.b16 %v249
      %v444 = vunpack.c.h.b16 %v249
      %v445 = vunpack.c.l.b16 %v250
      %v446 = vunpack.c.h.b16 %v250
      %v447 = vunpack.c.l.b16 %v251
      %v448 = vunpack.c.h.b16 %v251
      %v449 = vunpack.c.l.b16 %v252
      %v450 = vunpack.c.h.b16 %v252
      %v451 = vunpack.c.l.b16 %v253
      %v452 = vunpack.c.h.b16 %v253
      %v453 = vunpack.c.l.b16 %v254
      %v454 = vunpack.c.h.b16 %v254
      %v455 = vunpack.c.l.b16 %v255
      %v456 = vunpack.c.h.b16 %v255
      %v457 = vunpack.c.l.b16 %v256
      %v458 = vunpack.c.h.b16 %v256
      %v459 = vunpack.c.l.b16 %v257
      %v460 = vunpack.c.h.b16 %v257
      %v461 = vunpack.c.l.b16 %v258
      %v462 = vunpack.c.h.b16 %v258
      %v463 = vunpack.c.l.b16 %v259
      %v464 = vunpack.c.h.b16 %v259
      %v465 = vunpack.c.l.b16 %v260
      %v466 = vunpack.c.h.b16 %v260
      %v467 = vunpack.c.l.b16 %v261
      %v468 = vunpack.c.h.b16 %v261
      %v469 = vunpack.c.l.b16 %v262
      %v470 = vunpack.c.h.b16 %v262
      %v471 = vunpack.c.l.b16 %v263
      %v472 = vunpack.c.h.b16 %v263
      %v473 = vunpack.c.l.b16 %v264
      %v474 = vunpack.c.h.b16 %v264
      %v475 = vunpack.c.l.b16 %v265
      %v476 = vunpack.c.h.b16 %v265
      %v477 = vunpack.c.l.b16 %v266
      %v478 = vunpack.c.h.b16 %v266
      %v479 = vunpack.c.l.b16 %v267
      %v480 = vunpack.c.h.b16 %v267
      %v481 = vunpack.c.l.b16 %v268
      %v482 = vunpack.c.h.b16 %v268
      %v483 = vunpack.c.l.b16 %v269
      %v484 = vunpack.c.h.b16 %v269
      %v485 = vunpack.c.l.b16 %v270
      %v486 = vunpack.c.h.b16 %v270
      %v487 = vunpack.c.l.b16 %v271
      %v488 = vunpack.c.h.b16 %v271
      %v489 = vunpack.c.l.b16 %v272
      %v490 = vunpack.c.h.b16 %v272
      %v491 = vunpack.c.l.b16 %v273
      %v492 = vunpack.c.h.b16 %v273
      %v493 = vunpack.c.l.b16 %v274
      %v494 = vunpack.c.h.b16 %v274
      %v495 = vunpack.c.l.b16 %v275
      %v496 = vunpack.c.h.b16 %v275
      %v497 = vunpack.c.l.b16 %v276
      %v498 = vunpack.c.h.b16 %v276
      %v499 = vunpack.c.l.b16 %v277
      %v500 = vunpack.c.h.b16 %v277
      %v501 = vunpack.c.l.b16 %v278
      %v502 = vunpack.c.h.b16 %v278
      %v503 = vunpack.c.l.b16 %v279
      %v504 = vunpack.c.h.b16 %v279
      %v505 = vunpack.c.l.b16 %v280
      %v506 = vunpack.c.h.b16 %v280
      %v507 = vunpack.c.l.b16 %v281
      %v508 = vunpack.c.h.b16 %v281
      %v509 = vunpack.c.l.b16 %v282
      %v510 = vunpack.c.h.b16 %v282
      %v511 = vunpack.c.l.b16 %v283
      %v512 = vunpack.c.h.b16 %v283
      %v513 = vunpack.c.l.b16 %v284
      %v514 = vunpack.c.h.b16 %v284
      %v515 = vunpack.c.l.b16 %v285
      %v516 = vunpack.c.h.b16 %v285
      %v517 = vunpack.c.l.b16 %v286
      %v518 = vunpack.c.h.b16 %v286
      %v519 = vunpack.c.l.b16 %v287
      %v520 = vunpack.c.h.b16 %v287
      %v521 = vunpack.c.l.b16 %v288
      %v522 = vunpack.c.h.b16 %v288
      %v523 = vunpack.c.l.b16 %v289
      %v524 = vunpack.c.h.b16 %v289
      %v525 = vunpack.c.l.b16 %v290
      %v526 = vunpack.c.h.b16 %v290
      %v527 = vunpack.c.l.b16 %v291
      %v528 = vunpack.c.h.b16 %v291
      %v529 = vunpack.c.l.b16 %v292
      %v530 = vunpack.c.h.b16 %v292
      %v531 = vunpack.c.l.b16 %v293
      %v532 = vunpack.c.h.b16 %v293
      %v533 = vunpack.c.l.b16 %v294
      %v534 = vunpack.c.h.b16 %v294
      %v535 = vunpack.c.l.b16 %v295
      %v536 = vunpack.c.h.b16 %v295
      %v537 = vunpack.c.l.b16 %v296
      %v538 = vunpack.c.h.b16 %v296
      %v539 = vunpack.c.l.b16 %v297
      %v540 = vunpack.c.h.b16 %v297
      %v541 = vunpack.c.l.b16 %v298
      %v542 = vunpack.c.h.b16 %v298
      %v543 = vunpack.c.l.b16 %v299
      %v544 = vunpack.c.h.b16 %v299
      %v545 = vunpack.c.l.b16 %v300
      %v546 = vunpack.c.h.b16 %v300
      %v547 = vunpack.c.l.b16 %v301
      %v548 = vunpack.c.h.b16 %v301
      %v549 = vunpack.c.l.b16 %v302
      %v550 = vunpack.c.h.b16 %v302
      %v551 = vunpack.c.l.b16 %v303
      %v552 = vunpack.c.h.b16 %v303
      %v553 = vunpack.c.l.b16 %v304
      %v554 = vunpack.c.h.b16 %v304
      %v555 = vunpack.c.l.b16 %v305
      %v556 = vunpack.c.h.b16 %v305
      %v557 = vunpack.c.l.b16 %v306
      %v558 = vunpack.c.h.b16 %v306
      %v559 = vunpack.c.l.b16 %v307
      %v560 = vunpack.c.h.b16 %v307
      %v561 = vunpack.c.l.b16 %v308
      %v562 = vunpack.c.h.b16 %v308
      %v563 = vunpack.c.l.b16 %v309
      %v564 = vunpack.c.h.b16 %v309
      %v565 = vunpack.c.l.b16 %v310
      %v566 = vunpack.c.h.b16 %v310
      %v567 = vunpack.c.l.b16 %v311
      %v568 = vunpack.c.h.b16 %v311
      %v569 = vunpack.c.l.b16 %v312
      %v570 = vunpack.c.h.b16 %v312
      %v571 = vunpack.c.l.b16 %v313
      %v572 = vunpack.c.h.b16 %v313
      %v573 = vunpack.c.l.b16 %v314
      %v574 = vunpack.c.h.b16 %v314
      %v575 = vunpack.c.l.b16 %v315
      %v576 = vunpack.c.h.b16 %v315
      %v577 = vunpack.c.l.b16 %v316
      %v578 = vunpack.c.h.b16 %v316
      %v579 = vunpack.c.l.b16 %v317
      %v580 = vunpack.c.h.b16 %v317
      %v581 = vunpack.c.l.b16 %v318
      %v582 = vunpack.c.h.b16 %v318
      %v583 = vunpack.c.l.b16 %v319
      %v584 = vunpack.c.h.b16 %v319
      %v585 = vunpack.c.l.b16 %v320
      %v586 = vunpack.c.h.b16 %v320
      %v587 = vunpack.c.l.b16 %v321
      %v588 = vunpack.c.h.b16 %v321
      %v589 = vunpack.c.l.b16 %v322
      %v590 = vunpack.c.h.b16 %v322
      %v591 = vunpack.c.l.b16 %v323
      %v592 = vunpack.c.h.b16 %v323
      %v593 = vunpack.c.l.b16 %v324
      %v594 = vunpack.c.h.b16 %v324
      %v595 = vunpack.c.l.b16 %v325
      %v596 = vunpack.c.h.b16 %v325
      %v597 = vunpack.c.l.b16 %v326
      %v598 = vunpack.c.h.b16 %v326
      %v599 = vunpack.c.l.b16 %v327
      %v600 = vunpack.c.h.b16 %v327
      %v601 = vunpack.c.l.b16 %v328
      %v602 = vunpack.c.h.b16 %v328
      %v603 = vunpack.c.l.b16 %v329
      %v604 = vunpack.c.h.b16 %v329
      %v605 = vunpack.c.l.b16 %v330
      %v606 = vunpack.c.h.b16 %v330
      %v607 = vunpack.c.l.b16 %v331
      %v608 = vunpack.c.h.b16 %v331
      %v609 = vunpack.c.l.b16 %v332
      %v610 = vunpack.c.h.b16 %v332
      %v611 = vunpack.c.l.b16 %v333
      %v612 = vunpack.c.h.b16 %v333
      %v613 = vunpack.c.l.b16 %v334
      %v614 = vunpack.c.h.b16 %v334
      %v615 = vunpack.c.l.b16 %v335
      %v616 = vunpack.c.h.b16 %v335
      %v617 = vunpack.c.l.b16 %v336
      %v618 = vunpack.c.h.b16 %v336
      %v619 = vunpack.c.l.b16 %v337
      %v620 = vunpack.c.h.b16 %v337
      %v621 = vunpack.c.l.b16 %v338
      %v622 = vunpack.c.h.b16 %v338
      %v623 = vunpack.c.l.b16 %v339
      %v624 = vunpack.c.h.b16 %v339
      %v625 = vunpack.c.l.b16 %v340
      %v626 = vunpack.c.h.b16 %v340
      %v627 = vunpack.c.l.b16 %v341
      %v628 = vunpack.c.h.b16 %v341
      %v629 = vunpack.c.l.b16 %v342
      %v630 = vunpack.c.h.b16 %v342
      %v631 = vpack.c.b16 %v443, %v439
      %v632 = vpack.c.b16 %v444, %v440
      %v633 = vpack.c.b16 %v445, %v441
      %v634 = vpack.c.b16 %v446, %v442
      %v635 = vpack.c.b16 %v451, %v447
      %v636 = vpack.c.b16 %v452, %v448
      %v637 = vpack.c.b16 %v453, %v449
      %v638 = vpack.c.b16 %v454, %v450
      %v639 = vpack.c.b16 %v459, %v455
      %v640 = vpack.c.b16 %v460, %v456
      %v641 = vpack.c.b16 %v461, %v457
      %v642 = vpack.c.b16 %v462, %v458
      %v643 = vpack.c.b16 %v467, %v463
      %v644 = vpack.c.b16 %v468, %v464
      %v645 = vpack.c.b16 %v469, %v465
      %v646 = vpack.c.b16 %v470, %v466
      %v647 = vpack.c.b16 %v475, %v471
      %v648 = vpack.c.b16 %v476, %v472
      %v649 = vpack.c.b16 %v477, %v473
      %v650 = vpack.c.b16 %v478, %v474
      %v651 = vpack.c.b16 %v483, %v479
      %v652 = vpack.c.b16 %v484, %v480
      %v653 = vpack.c.b16 %v485, %v481
      %v654 = vpack.c.b16 %v486, %v482
      %v655 = vpack.c.b16 %v491, %v487
      %v656 = vpack.c.b16 %v492, %v488
      %v657 = vpack.c.b16 %v493, %v489
      %v658 = vpack.c.b16 %v494, %v490
      %v659 = vpack.c.b16 %v499, %v495
      %v660 = vpack.c.b16 %v500, %v496
      %v661 = vpack.c.b16 %v501, %v497
      %v662 = vpack.c.b16 %v502, %v498
      %v663 = vpack.c.b16 %v507, %v503
      %v664 = vpack.c.b16 %v508, %v504
      %v665 = vpack.c.b16 %v509, %v505
      %v666 = vpack.c.b16 %v510, %v506
      %v667 = vpack.c.b16 %v515, %v511
      %v668 = vpack.c.b16 %v516, %v512
      %v669 = vpack.c.b16 %v517, %v513
      %v670 = vpack.c.b16 %v518, %v514
      %v671 = vpack.c.b16 %v523, %v519
      %v672 = vpack.c.b16 %v524, %v520
      %v673 = vpack.c.b16 %v525, %v521
      %v674 = vpack.c.b16 %v526, %v522
      %v675 = vpack.c.b16 %v531, %v527
      %v676 = vpack.c.b16 %v532, %v528
      %v677 = vpack.c.b16 %v533, %v529
      %v678 = vpack.c.b16 %v534, %v530
      %v679 = vpack.c.b16 %v539, %v535
      %v680 = vpack.c.b16 %v540, %v536
      %v681 = vpack.c.b16 %v541, %v537
      %v682 = vpack.c.b16 %v542, %v538
      %v683 = vpack.c.b16 %v547, %v543
      %v684 = vpack.c.b16 %v548, %v544
      %v685 = vpack.c.b16 %v549, %v545
      %v686 = vpack.c.b16 %v550, %v546
      %v687 = vpack.c.b16 %v555, %v551
      %v688 = vpack.c.b16 %v556, %v552
      %v689 = vpack.c.b16 %v557, %v553
      %v690 = vpack.c.b16 %v558, %v554
      %v691 = vpack.c.b16 %v563, %v559
      %v692 = vpack.c.b16 %v564, %v560
      %v693 = vpack.c.b16 %v565, %v561
      %v694 = vpack.c.b16 %v566, %v562
      %v695 = vpack.c.b16 %v571, %v567
      %v696 = vpack.c.b16 %v572, %v568
      %v697 = vpack.c.b16 %v573, %v569
      %v698 = vpack.c.b16 %v574, %v570
      %v699 = vpack.c.b16 %v579, %v575
      %v700 = vpack.c.b16 %v580, %v576
      %v701 = vpack.c.b16 %v581, %v577
      %v702 = vpack.c.b16 %v582, %v578
      %v703 = vpack.c.b16 %v587, %v583
      %v704 = vpack.c.b16 %v588, %v584
      %v705 = vpack.c.b16 %v589, %v585
      %v706 = vpack.c.b16 %v590, %v586
      %v707 = vpack.c.b16 %v595, %v591
      %v708 = vpack.c.b16 %v596, %v592
      %v709 = vpack.c.b16 %v597, %v593
      %v710 = vpack.c.b16 %v598, %v594
      %v711 = vpack.c.b16 %v603, %v599
      %v712 = vpack.c.b16 %v604, %v600
      %v713 = vpack.c.b16 %v605, %v601
      %v714 = vpack.c.b16 %v606, %v602
      %v715 = vpack.c.b16 %v611, %v607
      %v716 = vpack.c.b16 %v612, %v608
      %v717 = vpack.c.b16 %v613, %v609
      %v718 = vpack.c.b16 %v614, %v610
      %v719 = vpack.c.b16 %v619, %v615
      %v720 = vpack.c.b16 %v620, %v616
      %v721 = vpack.c.b16 %v621, %v617
      %v722 = vpack.c.b16 %v622, %v618
      %v723 = vpack.c.b16 %v627, %v623
      %v724 = vpack.c.b16 %v628, %v624
      %v725 = vpack.c.b16 %v629, %v625
      %v726 = vpack.c.b16 %v630, %v626
      %823 = vmatprep.subr.bf16.mxu0 %v632
      %824 = vmatpush1.bf16.msra.mxu0 %v631
      %825 = vmatprep.subr.bf16.mxu0 %v636
      %826 = vmatpush1.bf16.msra.mxu0 %v635
      %827 = vmatprep.subr.bf16.mxu0 %v640
      %828 = vmatpush1.bf16.msra.mxu0 %v639
      %829 = vmatprep.subr.bf16.mxu0 %v644
      %830 = vmatpush1.bf16.msra.mxu0 %v643
      %831 = vmatprep.subr.bf16.mxu0 %v648
      %832 = vmatpush1.bf16.msra.mxu0 %v647
      %833 = vmatprep.subr.bf16.mxu0 %v652
      %834 = vmatpush1.bf16.msra.mxu0 %v651
      %835 = vmatprep.subr.bf16.mxu0 %v656
      %836 = vmatpush1.bf16.msra.mxu0 %v655
      %837 = vmatprep.subr.bf16.mxu0 %v660
      %838 = vmatpush1.bf16.msra.mxu0 %v659
      %839 = vmatprep.subr.bf16.mxu0 %v664
      %840 = vmatpush1.bf16.msra.mxu0 %v663
      %841 = vmatprep.subr.bf16.mxu0 %v668
      %842 = vmatpush1.bf16.msra.mxu0 %v667
      %843 = vmatprep.subr.bf16.mxu0 %v672
      %844 = vmatpush1.bf16.msra.mxu0 %v671
      %845 = vmatprep.subr.bf16.mxu0 %v676
      %846 = vmatpush1.bf16.msra.mxu0 %v675
      %847 = vmatprep.subr.bf16.mxu0 %v680
      %848 = vmatpush1.bf16.msra.mxu0 %v679
      %849 = vmatprep.subr.bf16.mxu0 %v684
      %850 = vmatpush1.bf16.msra.mxu0 %v683
      %851 = vmatprep.subr.bf16.mxu0 %v688
      %852 = vmatpush1.bf16.msra.mxu0 %v687
      %853 = vmatprep.subr.bf16.mxu0 %v692
      %854 = vmatpush1.bf16.msra.mxu0 %v691
      %855 = vmatprep.mubr.bf16.mxu0 %v245
      %856 = vmatmul.mubr.bf16.gmra.mrb[0].mxu0 %v244
      %v857 = vpop.f32.mrb[0].mxu0
      %v858 = vadd.f32 0.0, %v857
      %v859 = vpop.f32.mrb[0].mxu0
      %v860 = vadd.f32 0.0, %v859
      %v861 = vpop.f32.mrb[0].mxu0
      %v862 = vadd.f32 0.0, %v861
      %v863 = vpop.f32.mrb[0].mxu0
      %v864 = vadd.f32 0.0, %v863
      %865 = vdwg.mxu0
      %866 = vmatprep.subr.bf16.mxu0 %v696
      %867 = vmatpush1.bf16.msra.mxu0 %v695
      %868 = vmatprep.subr.bf16.mxu0 %v700
      %869 = vmatpush1.bf16.msra.mxu0 %v699
      %870 = vmatprep.subr.bf16.mxu0 %v704
      %871 = vmatpush1.bf16.msra.mxu0 %v703
      %872 = vmatprep.subr.bf16.mxu0 %v708
      %873 = vmatpush1.bf16.msra.mxu0 %v707
      %874 = vmatprep.subr.bf16.mxu0 %v712
      %875 = vmatpush1.bf16.msra.mxu0 %v711
      %876 = vmatprep.subr.bf16.mxu0 %v716
      %877 = vmatpush1.bf16.msra.mxu0 %v715
      %878 = vmatprep.subr.bf16.mxu0 %v720
      %879 = vmatpush1.bf16.msra.mxu0 %v719
      %880 = vmatprep.subr.bf16.mxu0 %v724
      %881 = vmatpush1.bf16.msra.mxu0 %v723
      %882 = vmatprep.subr.bf16.mxu0 0
      %883 = vmatpush1.bf16.msra.mxu0 0
      %884 = vmatprep.subr.bf16.mxu0 0
      %885 = vmatpush1.bf16.msra.mxu0 0
      %886 = vmatprep.subr.bf16.mxu0 0
      %887 = vmatpush1.bf16.msra.mxu0 0
      %888 = vmatprep.subr.bf16.mxu0 0
      %889 = vmatpush1.bf16.msra.mxu0 0
      %890 = vmatprep.subr.bf16.mxu0 0
      %891 = vmatpush1.bf16.msra.mxu0 0
      %892 = vmatprep.subr.bf16.mxu0 0
      %893 = vmatpush1.bf16.msra.mxu0 0
      %894 = vmatprep.subr.bf16.mxu0 0
      %895 = vmatpush1.bf16.msra.mxu0 0
      %896 = vmatprep.subr.bf16.mxu0 0
      %897 = vmatpush1.bf16.msra.mxu0 0
      %898 = vmatprep.mubr.bf16.mxu0 0
      %899 = vmatmul.mubr.bf16.gmra.mrb[0].mxu0 %v246
      %v900 = vpop.f32.mrb[0].mxu0
      %v901 = vadd.f32 %v858, %v900
      %v902 = vpop.f32.mrb[0].mxu0
      %v903 = vadd.f32 %v860, %v902
      %v904 = vpop.f32.mrb[0].mxu0
      %v905 = vadd.f32 %v862, %v904
      %v906 = vpop.f32.mrb[0].mxu0
      %v907 = vadd.f32 %v864, %v906
      %908 = vdwg.mxu0
      %909 = vmatprep.subr.bf16.mxu0 %v634
      %910 = vmatpush1.bf16.msra.mxu0 %v633
      %911 = vmatprep.subr.bf16.mxu0 %v638
      %912 = vmatpush1.bf16.msra.mxu0 %v637
      %913 = vmatprep.subr.bf16.mxu0 %v642
      %914 = vmatpush1.bf16.msra.mxu0 %v641
      %915 = vmatprep.subr.bf16.mxu0 %v646
      %916 = vmatpush1.bf16.msra.mxu0 %v645
      %917 = vmatprep.subr.bf16.mxu0 %v650
      %918 = vmatpush1.bf16.msra.mxu0 %v649
      %919 = vmatprep.subr.bf16.mxu0 %v654
      %920 = vmatpush1.bf16.msra.mxu0 %v653
      %921 = vmatprep.subr.bf16.mxu0 %v658
      %922 = vmatpush1.bf16.msra.mxu0 %v657
      %923 = vmatprep.subr.bf16.mxu0 %v662
      %924 = vmatpush1.bf16.msra.mxu0 %v661
      %925 = vmatprep.subr.bf16.mxu0 %v666
      %926 = vmatpush1.bf16.msra.mxu0 %v665
      %927 = vmatprep.subr.bf16.mxu0 %v670
      %928 = vmatpush1.bf16.msra.mxu0 %v669
      %929 = vmatprep.subr.bf16.mxu0 %v674
      %930 = vmatpush1.bf16.msra.mxu0 %v673
      %931 = vmatprep.subr.bf16.mxu0 %v678
      %932 = vmatpush1.bf16.msra.mxu0 %v677
      %933 = vmatprep.subr.bf16.mxu0 %v682
      %934 = vmatpush1.bf16.msra.mxu0 %v681
      %935 = vmatprep.subr.bf16.mxu0 %v686
      %936 = vmatpush1.bf16.msra.mxu0 %v685
      %937 = vmatprep.subr.bf16.mxu0 %v690
      %938 = vmatpush1.bf16.msra.mxu0 %v689
      %939 = vmatprep.subr.bf16.mxu0 %v694
      %940 = vmatpush1.bf16.msra.mxu0 %v693
      %941 = vmatprep.mubr.bf16.mxu0 %v245
      %942 = vmatmul.mubr.bf16.gmra.mrb[0].mxu0 %v244
      %v943 = vpop.f32.mrb[0].mxu0
      %v944 = vadd.f32 0.0, %v943
      %v945 = vpop.f32.mrb[0].mxu0
      %v946 = vadd.f32 0.0, %v945
      %v947 = vpop.f32.mrb[0].mxu0
      %v948 = vadd.f32 0.0, %v947
      %v949 = vpop.f32.mrb[0].mxu0
      %v950 = vadd.f32 0.0, %v949
      %951 = vdwg.mxu0
      %952 = vmatprep.subr.bf16.mxu0 %v698
      %953 = vmatpush1.bf16.msra.mxu0 %v697
      %954 = vmatprep.subr.bf16.mxu0 %v702
      %955 = vmatpush1.bf16.msra.mxu0 %v701
      %956 = vmatprep.subr.bf16.mxu0 %v706
      %957 = vmatpush1.bf16.msra.mxu0 %v705
      %958 = vmatprep.subr.bf16.mxu0 %v710
      %959 = vmatpush1.bf16.msra.mxu0 %v709
      %960 = vmatprep.subr.bf16.mxu0 %v714
      %961 = vmatpush1.bf16.msra.mxu0 %v713
      %962 = vmatprep.subr.bf16.mxu0 %v718
      %963 = vmatpush1.bf16.msra.mxu0 %v717
      %964 = vmatprep.subr.bf16.mxu0 %v722
      %965 = vmatpush1.bf16.msra.mxu0 %v721
      %966 = vmatprep.subr.bf16.mxu0 %v726
      %967 = vmatpush1.bf16.msra.mxu0 %v725
      %968 = vmatprep.subr.bf16.mxu0 0
      %969 = vmatpush1.bf16.msra.mxu0 0
      %970 = vmatprep.subr.bf16.mxu0 0
      %971 = vmatpush1.bf16.msra.mxu0 0
      %972 = vmatprep.subr.bf16.mxu0 0
      %973 = vmatpush1.bf16.msra.mxu0 0
      %974 = vmatprep.subr.bf16.mxu0 0
      %975 = vmatpush1.bf16.msra.mxu0 0
      %976 = vmatprep.subr.bf16.mxu0 0
      %977 = vmatpush1.bf16.msra.mxu0 0
      %978 = vmatprep.subr.bf16.mxu0 0
      %979 = vmatpush1.bf16.msra.mxu0 0
      %980 = vmatprep.subr.bf16.mxu0 0
      %981 = vmatpush1.bf16.msra.mxu0 0
      %982 = vmatprep.subr.bf16.mxu0 0
      %983 = vmatpush1.bf16.msra.mxu0 0
      %984 = vmatprep.mubr.bf16.mxu0 0
      %985 = vmatmul.mubr.bf16.gmra.mrb[0].mxu0 %v246
      %v986 = vpop.f32.mrb[0].mxu0
      %v987 = vadd.f32 %v944, %v986
      %v988 = vpop.f32.mrb[0].mxu0
      %v989 = vadd.f32 %v946, %v988
      %v990 = vpop.f32.mrb[0].mxu0
      %v991 = vadd.f32 %v948, %v990
      %v992 = vpop.f32.mrb[0].mxu0
      %v993 = vadd.f32 %v950, %v992
      %994 = vdwg.mxu0
      %v995 = vld [vmem:[%s4] sm:$0x7]
      %v996 = vlaneseq
      %v997 = vshrl.u32 %v996, 7
      %v998 = vsub.s32 0, %v997
      %v999 = vrot.slane %v995, %v998
      %v1000 = vlaneseq
      %v1001 = vshrl.u32 %v1000, 7
      %v1002 = vsub.s32 1, %v1001
      %v1003 = vrot.slane %v995, %v1002
      %v1004 = vlaneseq
      %v1005 = vshrl.u32 %v1004, 7
      %v1006 = vsub.s32 2, %v1005
      %v1007 = vrot.slane %v995, %v1006
      %v1008 = vadd.f32 %v901, %v999
      %v1009 = vadd.f32 %v905, %v999
      %v1010 = vmax.f32 %v1008, 0.0
      %v1011 = vmax.f32 %v1009, 0.0
      %v1012 = vadd.f32 %v903, %v999
      %v1013 = vadd.f32 %v907, %v999
      %v1014 = vmax.f32 %v1012, 0.0
      %v1015 = vmax.f32 %v1013, 0.0
      %v1016 = vadd.f32 %v987, %v999
      %v1017 = vadd.f32 %v991, %v999
      %v1018 = vmax.f32 %v1016, 0.0
      %v1019 = vmax.f32 %v1017, 0.0
      %v1020 = vadd.f32 %v989, %v999
      %v1021 = vadd.f32 %v993, %v999
      %v1022 = vmax.f32 %v1020, 0.0
      %v1023 = vmax.f32 %v1021, 0.0
      %v1024 = vld [vmem:[%s2] sm:$0xff]
      %v1025 = vld [vmem:[%s2 + $0x8] sm:$0x1]
      %v1026 = vlaneseq
      %v1027 = vshrl.u32 %v1026, 7
      %v1028 = vsub.s32 0, %v1027
      %v1029 = vrot.slane %v1024, %v1028
      %v1030 = vlaneseq
      %v1031 = vshrl.u32 %v1030, 7
      %v1032 = vsub.s32 1, %v1031
      %v1033 = vrot.slane %v1024, %v1032
      %v1034 = vlaneseq
      %v1035 = vshrl.u32 %v1034, 7
      %v1036 = vsub.s32 2, %v1035
      %v1037 = vrot.slane %v1024, %v1036
      %v1038 = vlaneseq
      %v1039 = vshrl.u32 %v1038, 7
      %v1040 = vsub.s32 3, %v1039
      %v1041 = vrot.slane %v1024, %v1040
      %v1042 = vlaneseq
      %v1043 = vshrl.u32 %v1042, 7
      %v1044 = vsub.s32 4, %v1043
      %v1045 = vrot.slane %v1024, %v1044
      %v1046 = vlaneseq
      %v1047 = vshrl.u32 %v1046, 7
      %v1048 = vsub.s32 5, %v1047
      %v1049 = vrot.slane %v1024, %v1048
      %v1050 = vlaneseq
      %v1051 = vshrl.u32 %v1050, 7
      %v1052 = vsub.s32 6, %v1051
      %v1053 = vrot.slane %v1024, %v1052
      %v1054 = vlaneseq
      %v1055 = vshrl.u32 %v1054, 7
      %v1056 = vsub.s32 7, %v1055
      %v1057 = vrot.slane %v1024, %v1056
      %v1058 = vlaneseq
      %v1059 = vshrl.u32 %v1058, 7
      %v1060 = vsub.s32 0, %v1059
      %v1061 = vrot.slane %v1025, %v1060
      %v1062 = vld [vmem:[%s3] sm:$0xf]
      %v1063 = vld [vmem:[%s3 + $0x4] sm:$0xf]
      %v1064 = vld [vmem:[%s3 + $0x8] sm:$0xf]
      %v1065 = vld [vmem:[%s3 + $0xc] sm:$0xf]
      %v1066 = vld [vmem:[%s3 + $0x10] sm:$0xf]
      %v1067 = vld [vmem:[%s3 + $0x14] sm:$0xf]
      %v1068 = vld [vmem:[%s3 + $0x18] sm:$0xf]
      %v1069 = vld [vmem:[%s3 + $0x1c] sm:$0xf]
      %v1070 = vld [vmem:[%s3 + $0x20] sm:$0xf]
      %v1071 = vld [vmem:[%s3 + $0x24] sm:$0xf]
      %v1072 = vld [vmem:[%s3 + $0x28] sm:$0xf]
      %v1073 = vld [vmem:[%s3 + $0x2c] sm:$0xf]
      %v1074 = vld [vmem:[%s3 + $0x30] sm:$0xf]
      %v1075 = vld [vmem:[%s3 + $0x34] sm:$0xf]
      %v1076 = vld [vmem:[%s3 + $0x38] sm:$0xf]
      %v1077 = vld [vmem:[%s3 + $0x3c] sm:$0xf]
      %v1080 = vrot.slane %v1022, 7
      %v1081 = vrot.slane %v1023, 7
      %v1082 = vsel %vm230, %v1080, %v1081
      %v1085 = vsel %vm230, 0.0, %v1080
      %1087 = vrot.lane.b32.xlu0 %v1085, 8
      %v1088 = vpop.permute.xlu0 %1087
      %1089 = vrot.lane.b32.xlu0 %v1082, 8
      %v1090 = vpop.permute.xlu0 %1089
      %vm1093 = vcmask 64512
      %v1094 = vsel %vm1093, 0.0, %v1088
      %v1095 = vsel %vm1093, 0.0, %v1090
      %v1096 = vmul.f32 %v1094, %v1029
      %v1097 = vmul.f32 %v1095, %v1029
      %v1098 = vadd.f32 %v1096, 0.0
      %v1099 = vadd.f32 %v1097, 0.0
      %v1102 = vrot.slane %v1018, 7
      %v1103 = vrot.slane %v1019, 7
      %v1104 = vsel %vm230, %v1102, %v1103
      %v1107 = vsel %vm230, 0.0, %v1102
      %v1108 = vmul.f32 %v1107, %v1033
      %v1109 = vmul.f32 %v1104, %v1033
      %v1110 = vadd.f32 %v1098, %v1108
      %v1111 = vadd.f32 %v1099, %v1109
      %v1112 = vmul.f32 %v1085, %v1037
      %v1113 = vmul.f32 %v1082, %v1037
      %v1114 = vadd.f32 %v1110, %v1112
      %v1115 = vadd.f32 %v1111, %v1113
      %1118 = vrot.lane.b32.xlu0 %v1014, 8
      %v1119 = vpop.permute.xlu0 %1118
      %1120 = vrot.lane.b32.xlu0 %v1015, 8
      %v1121 = vpop.permute.xlu0 %1120
      %v1124 = vsel %vm1093, 0.0, %v1119
      %v1125 = vsel %vm1093, 0.0, %v1121
      %v1126 = vmul.f32 %v1124, %v1041
      %v1127 = vmul.f32 %v1125, %v1041
      %v1128 = vadd.f32 %v1114, %v1126
      %v1129 = vadd.f32 %v1115, %v1127
      %v1130 = vmul.f32 %v1010, %v1045
      %v1131 = vmul.f32 %v1011, %v1045
      %v1132 = vadd.f32 %v1128, %v1130
      %v1133 = vadd.f32 %v1129, %v1131
      %v1134 = vmul.f32 %v1014, %v1049
      %v1135 = vmul.f32 %v1015, %v1049
      %v1136 = vadd.f32 %v1132, %v1134
      %v1137 = vadd.f32 %v1133, %v1135
      %1138 = vrot.lane.b32.xlu0 %v1022, 8
      %v1139 = vpop.permute.xlu0 %1138
      %1140 = vrot.lane.b32.xlu0 %v1023, 8
      %v1141 = vpop.permute.xlu0 %1140
      %v1144 = vsel %vm1093, 0.0, %v1139
      %v1145 = vsel %vm1093, 0.0, %v1141
      %v1146 = vmul.f32 %v1144, %v1053
      %v1147 = vmul.f32 %v1145, %v1053
      %v1148 = vadd.f32 %v1136, %v1146
      %v1149 = vadd.f32 %v1137, %v1147
      %v1150 = vmul.f32 %v1018, %v1057
      %v1151 = vmul.f32 %v1019, %v1057
      %v1152 = vadd.f32 %v1148, %v1150
      %v1153 = vadd.f32 %v1149, %v1151
      %v1154 = vmul.f32 %v1022, %v1061
      %v1155 = vmul.f32 %v1023, %v1061
      %v1156 = vadd.f32 %v1152, %v1154
      %v1157 = vadd.f32 %v1153, %v1155
      %v1158 = vadd.f32 %v1156, %v1003
      %v1159 = vadd.f32 %v1157, %v1003
      %v1160 = vmax.f32 %v1158, 0.0
      %v1161 = vmax.f32 %v1159, 0.0
      %v1162 = vpack.c.bf16 %v1161, %v1160
      %v1179 = vunpack.c.l.b16 %v1062
      %v1180 = vunpack.c.l.b16 %v1063
      %v1181 = vunpack.c.l.b16 %v1064
      %v1182 = vunpack.c.l.b16 %v1065
      %v1183 = vunpack.c.l.b16 %v1066
      %v1184 = vunpack.c.l.b16 %v1067
      %v1185 = vunpack.c.l.b16 %v1068
      %v1186 = vunpack.c.l.b16 %v1069
      %v1187 = vunpack.c.l.b16 %v1070
      %v1188 = vunpack.c.l.b16 %v1071
      %v1189 = vunpack.c.l.b16 %v1072
      %v1190 = vunpack.c.l.b16 %v1073
      %v1191 = vunpack.c.l.b16 %v1074
      %v1192 = vunpack.c.l.b16 %v1075
      %v1193 = vunpack.c.l.b16 %v1076
      %v1194 = vunpack.c.l.b16 %v1077
      %v1195 = vpack.c.b16 %v1180, %v1179
      %v1196 = vpack.c.b16 %v1182, %v1181
      %v1197 = vpack.c.b16 %v1184, %v1183
      %v1198 = vpack.c.b16 %v1186, %v1185
      %v1199 = vpack.c.b16 %v1188, %v1187
      %v1200 = vpack.c.b16 %v1190, %v1189
      %v1201 = vpack.c.b16 %v1192, %v1191
      %v1202 = vpack.c.b16 %v1194, %v1193
      %1211 = vmatprep.subr.bf16.mxu0 0
      %1212 = vmatpush1.bf16.msra.mxu0 %v1195
      %1213 = vmatprep.subr.bf16.mxu0 0
      %1214 = vmatpush1.bf16.msra.mxu0 %v1196
      %1215 = vmatprep.subr.bf16.mxu0 0
      %1216 = vmatpush1.bf16.msra.mxu0 %v1197
      %1217 = vmatprep.subr.bf16.mxu0 0
      %1218 = vmatpush1.bf16.msra.mxu0 %v1198
      %1219 = vmatprep.subr.bf16.mxu0 0
      %1220 = vmatpush1.bf16.msra.mxu0 %v1199
      %1221 = vmatprep.subr.bf16.mxu0 0
      %1222 = vmatpush1.bf16.msra.mxu0 %v1200
      %1223 = vmatprep.subr.bf16.mxu0 0
      %1224 = vmatpush1.bf16.msra.mxu0 %v1201
      %1225 = vmatprep.subr.bf16.mxu0 0
      %1226 = vmatpush1.bf16.msra.mxu0 %v1202
      %1227 = vmatprep.subr.bf16.mxu0 0
      %1228 = vmatpush1.bf16.msra.mxu0 0
      %1229 = vmatprep.subr.bf16.mxu0 0
      %1230 = vmatpush1.bf16.msra.mxu0 0
      %1231 = vmatprep.subr.bf16.mxu0 0
      %1232 = vmatpush1.bf16.msra.mxu0 0
      %1233 = vmatprep.subr.bf16.mxu0 0
      %1234 = vmatpush1.bf16.msra.mxu0 0
      %1235 = vmatprep.subr.bf16.mxu0 0
      %1236 = vmatpush1.bf16.msra.mxu0 0
      %1237 = vmatprep.subr.bf16.mxu0 0
      %1238 = vmatpush1.bf16.msra.mxu0 0
      %1239 = vmatprep.subr.bf16.mxu0 0
      %1240 = vmatpush1.bf16.msra.mxu0 0
      %1241 = vmatprep.subr.bf16.mxu0 0
      %1242 = vmatpush1.bf16.msra.mxu0 0
      %1243 = vmatprep.mubr.bf16.mxu0 0
      %1244 = vmatmul.mubr.bf16.gmra.mrb[0].mxu0 %v1162
      %v1245 = vpop.f32.mrb[0].mxu0
      %v1246 = vadd.f32 %v1007, %v1245
      %v1247 = vpop.f32.mrb[0].mxu0
      %v1248 = vpop.f32.mrb[0].mxu0
      %v1249 = vadd.f32 %v1007, %v1248
      %v1250 = vpop.f32.mrb[0].mxu0
      %1251 = vdwg.mxu0
      %v1252 = vmax.f32 %v1246, 0.0
      %v1253 = vmax.f32 %v1249, 0.0
      %1254 = vst [vmem:[%s224] sm:$0xff] %v1252
      %1255 = vst [vmem:[%s224 + $0x20] sm:$0xff] %v1253
      %v1256 = vmul.f32 %v1107, %v1029
      %v1257 = vmul.f32 %v1104, %v1029
      %v1258 = vadd.f32 %v1256, 0.0
      %v1259 = vadd.f32 %v1257, 0.0
      %v1260 = vmul.f32 %v1085, %v1033
      %v1261 = vmul.f32 %v1082, %v1033
      %v1262 = vadd.f32 %v1258, %v1260
      %v1263 = vadd.f32 %v1259, %v1261
      %1265 = vrot.lane.b32.xlu0 %v1107, 120
      %v1266 = vpop.permute.xlu0 %1265
      %1267 = vrot.lane.b32.xlu0 %v1104, 120
      %v1268 = vpop.permute.xlu0 %1267
      %vm1271 = vcmask 982016
      %v1272 = vsel %vm1271, %v1266, 0.0
      %v1273 = vsel %vm1271, %v1268, 0.0
      %v1274 = vmul.f32 %v1272, %v1037
      %v1275 = vmul.f32 %v1273, %v1037
      %v1276 = vadd.f32 %v1262, %v1274
      %v1277 = vadd.f32 %v1263, %v1275
      %v1278 = vmul.f32 %v1010, %v1041
      %v1279 = vmul.f32 %v1011, %v1041
      %v1280 = vadd.f32 %v1276, %v1278
      %v1281 = vadd.f32 %v1277, %v1279
      %v1282 = vmul.f32 %v1014, %v1045
      %v1283 = vmul.f32 %v1015, %v1045
      %v1284 = vadd.f32 %v1280, %v1282
      %v1285 = vadd.f32 %v1281, %v1283
      %1288 = vrot.lane.b32.xlu0 %v1010, 120
      %v1289 = vpop.permute.xlu0 %1288
      %1290 = vrot.lane.b32.xlu0 %v1011, 120
      %v1291 = vpop.permute.xlu0 %1290
      %v1294 = vsel %vm1271, %v1289, 0.0
      %v1295 = vsel %vm1271, %v1291, 0.0
      %v1296 = vmul.f32 %v1294, %v1049
      %v1297 = vmul.f32 %v1295, %v1049
      %v1298 = vadd.f32 %v1284, %v1296
      %v1299 = vadd.f32 %v1285, %v1297
      %v1300 = vmul.f32 %v1018, %v1053
      %v1301 = vmul.f32 %v1019, %v1053
      %v1302 = vadd.f32 %v1298, %v1300
      %v1303 = vadd.f32 %v1299, %v1301
      %v1304 = vmul.f32 %v1022, %v1057
      %v1305 = vmul.f32 %v1023, %v1057
      %v1306 = vadd.f32 %v1302, %v1304
      %v1307 = vadd.f32 %v1303, %v1305
      %1308 = vrot.lane.b32.xlu0 %v1018, 120
      %v1309 = vpop.permute.xlu0 %1308
      %1310 = vrot.lane.b32.xlu0 %v1019, 120
      %v1311 = vpop.permute.xlu0 %1310
      %v1314 = vsel %vm1271, %v1309, 0.0
      %v1315 = vsel %vm1271, %v1311, 0.0
      %v1316 = vmul.f32 %v1314, %v1061
      %v1317 = vmul.f32 %v1315, %v1061
      %v1318 = vadd.f32 %v1306, %v1316
      %v1319 = vadd.f32 %v1307, %v1317
      %v1320 = vadd.f32 %v1318, %v1003
      %v1321 = vadd.f32 %v1319, %v1003
      %v1322 = vmax.f32 %v1320, 0.0
      %v1323 = vmax.f32 %v1321, 0.0
      %v1324 = vpack.c.bf16 %v1323, %v1322
      %1325 = vmatprep.subr.bf16.mxu0 0
      %1326 = vmatpush1.bf16.msra.mxu0 %v1195
      %1327 = vmatprep.subr.bf16.mxu0 0
      %1328 = vmatpush1.bf16.msra.mxu0 %v1196
      %1329 = vmatprep.subr.bf16.mxu0 0
      %1330 = vmatpush1.bf16.msra.mxu0 %v1197
      %1331 = vmatprep.subr.bf16.mxu0 0
      %1332 = vmatpush1.bf16.msra.mxu0 %v1198
      %1333 = vmatprep.subr.bf16.mxu0 0
      %1334 = vmatpush1.bf16.msra.mxu0 %v1199
      %1335 = vmatprep.subr.bf16.mxu0 0
      %1336 = vmatpush1.bf16.msra.mxu0 %v1200
      %1337 = vmatprep.subr.bf16.mxu0 0
      %1338 = vmatpush1.bf16.msra.mxu0 %v1201
      %1339 = vmatprep.subr.bf16.mxu0 0
      %1340 = vmatpush1.bf16.msra.mxu0 %v1202
      %1341 = vmatprep.subr.bf16.mxu0 0
      %1342 = vmatpush1.bf16.msra.mxu0 0
      %1343 = vmatprep.subr.bf16.mxu0 0
      %1344 = vmatpush1.bf16.msra.mxu0 0
      %1345 = vmatprep.subr.bf16.mxu0 0
      %1346 = vmatpush1.bf16.msra.mxu0 0
      %1347 = vmatprep.subr.bf16.mxu0 0
      %1348 = vmatpush1.bf16.msra.mxu0 0
      %1349 = vmatprep.subr.bf16.mxu0 0
      %1350 = vmatpush1.bf16.msra.mxu0 0
      %1351 = vmatprep.subr.bf16.mxu0 0
      %1352 = vmatpush1.bf16.msra.mxu0 0
      %1353 = vmatprep.subr.bf16.mxu0 0
      %1354 = vmatpush1.bf16.msra.mxu0 0
      %1355 = vmatprep.subr.bf16.mxu0 0
      %1356 = vmatpush1.bf16.msra.mxu0 0
      %1357 = vmatprep.mubr.bf16.mxu0 0
      %1358 = vmatmul.mubr.bf16.gmra.mrb[0].mxu0 %v1324
      %v1359 = vpop.f32.mrb[0].mxu0
      %v1360 = vadd.f32 %v1007, %v1359
      %v1361 = vpop.f32.mrb[0].mxu0
      %v1362 = vpop.f32.mrb[0].mxu0
      %v1363 = vadd.f32 %v1007, %v1362
      %v1364 = vpop.f32.mrb[0].mxu0
      %1365 = vdwg.mxu0
      %v1366 = vmax.f32 %v1360, 0.0
      %v1367 = vmax.f32 %v1363, 0.0
      %1368 = vst [vmem:[%s224 + $0x8] sm:$0xff] %v1366
      %1369 = vst [vmem:[%s224 + $0x28] sm:$0xff] %v1367
      %v1370 = vmul.f32 %v1124, %v1029
      %v1371 = vmul.f32 %v1125, %v1029
      %v1372 = vadd.f32 %v1370, 0.0
      %v1373 = vadd.f32 %v1371, 0.0
      %v1374 = vmul.f32 %v1010, %v1033
      %v1375 = vmul.f32 %v1011, %v1033
      %v1376 = vadd.f32 %v1372, %v1374
      %v1377 = vadd.f32 %v1373, %v1375
      %v1378 = vmul.f32 %v1014, %v1037
      %v1379 = vmul.f32 %v1015, %v1037
      %v1380 = vadd.f32 %v1376, %v1378
      %v1381 = vadd.f32 %v1377, %v1379
      %v1382 = vmul.f32 %v1144, %v1041
      %v1383 = vmul.f32 %v1145, %v1041
      %v1384 = vadd.f32 %v1380, %v1382
      %v1385 = vadd.f32 %v1381, %v1383
      %v1386 = vmul.f32 %v1018, %v1045
      %v1387 = vmul.f32 %v1019, %v1045
      %v1388 = vadd.f32 %v1384, %v1386
      %v1389 = vadd.f32 %v1385, %v1387
      %v1390 = vmul.f32 %v1022, %v1049
      %v1391 = vmul.f32 %v1023, %v1049
      %v1392 = vadd.f32 %v1388, %v1390
      %v1393 = vadd.f32 %v1389, %v1391
      %v1394 = vrot.slane %v1014, 1
      %v1395 = vrot.slane %v1015, 1
      %v1396 = vsel %vm237, %v1394, %v1395
      %v1399 = vsel %vm237, %v1395, 0.0
      %1401 = vrot.lane.b32.xlu0 %v1396, 8
      %v1402 = vpop.permute.xlu0 %1401
      %1403 = vrot.lane.b32.xlu0 %v1399, 8
      %v1404 = vpop.permute.xlu0 %1403
      %v1407 = vsel %vm1093, 0.0, %v1402
      %v1408 = vsel %vm1093, 0.0, %v1404
      %v1409 = vmul.f32 %v1407, %v1053
      %v1410 = vmul.f32 %v1408, %v1053
      %v1411 = vadd.f32 %v1392, %v1409
      %v1412 = vadd.f32 %v1393, %v1410
      %v1413 = vrot.slane %v1010, 1
      %v1414 = vrot.slane %v1011, 1
      %v1415 = vsel %vm237, %v1413, %v1414
      %v1418 = vsel %vm237, %v1414, 0.0
      %v1419 = vmul.f32 %v1415, %v1057
      %v1420 = vmul.f32 %v1418, %v1057
      %v1421 = vadd.f32 %v1411, %v1419
      %v1422 = vadd.f32 %v1412, %v1420
      %v1423 = vmul.f32 %v1396, %v1061
      %v1424 = vmul.f32 %v1399, %v1061
      %v1425 = vadd.f32 %v1421, %v1423
      %v1426 = vadd.f32 %v1422, %v1424
      %v1427 = vadd.f32 %v1425, %v1003
      %v1428 = vadd.f32 %v1426, %v1003
      %v1429 = vmax.f32 %v1427, 0.0
      %v1430 = vmax.f32 %v1428, 0.0
      %v1431 = vpack.c.bf16 %v1430, %v1429
      %1432 = vmatprep.subr.bf16.mxu0 0
      %1433 = vmatpush1.bf16.msra.mxu0 %v1195
      %1434 = vmatprep.subr.bf16.mxu0 0
      %1435 = vmatpush1.bf16.msra.mxu0 %v1196
      %1436 = vmatprep.subr.bf16.mxu0 0
      %1437 = vmatpush1.bf16.msra.mxu0 %v1197
      %1438 = vmatprep.subr.bf16.mxu0 0
      %1439 = vmatpush1.bf16.msra.mxu0 %v1198
      %1440 = vmatprep.subr.bf16.mxu0 0
      %1441 = vmatpush1.bf16.msra.mxu0 %v1199
      %1442 = vmatprep.subr.bf16.mxu0 0
      %1443 = vmatpush1.bf16.msra.mxu0 %v1200
      %1444 = vmatprep.subr.bf16.mxu0 0
      %1445 = vmatpush1.bf16.msra.mxu0 %v1201
      %1446 = vmatprep.subr.bf16.mxu0 0
      %1447 = vmatpush1.bf16.msra.mxu0 %v1202
      %1448 = vmatprep.subr.bf16.mxu0 0
      %1449 = vmatpush1.bf16.msra.mxu0 0
      %1450 = vmatprep.subr.bf16.mxu0 0
      %1451 = vmatpush1.bf16.msra.mxu0 0
      %1452 = vmatprep.subr.bf16.mxu0 0
      %1453 = vmatpush1.bf16.msra.mxu0 0
      %1454 = vmatprep.subr.bf16.mxu0 0
      %1455 = vmatpush1.bf16.msra.mxu0 0
      %1456 = vmatprep.subr.bf16.mxu0 0
      %1457 = vmatpush1.bf16.msra.mxu0 0
      %1458 = vmatprep.subr.bf16.mxu0 0
      %1459 = vmatpush1.bf16.msra.mxu0 0
      %1460 = vmatprep.subr.bf16.mxu0 0
      %1461 = vmatpush1.bf16.msra.mxu0 0
      %1462 = vmatprep.subr.bf16.mxu0 0
      %1463 = vmatpush1.bf16.msra.mxu0 0
      %1464 = vmatprep.mubr.bf16.mxu0 0
      %1465 = vmatmul.mubr.bf16.gmra.mrb[0].mxu0 %v1431
      %v1466 = vpop.f32.mrb[0].mxu0
      %v1467 = vadd.f32 %v1007, %v1466
      %v1468 = vpop.f32.mrb[0].mxu0
      %v1469 = vpop.f32.mrb[0].mxu0
      %v1470 = vadd.f32 %v1007, %v1469
      %v1471 = vpop.f32.mrb[0].mxu0
      %1472 = vdwg.mxu0
      %v1473 = vmax.f32 %v1467, 0.0
      %v1474 = vmax.f32 %v1470, 0.0
      %1475 = vst [vmem:[%s224 + $0x10] sm:$0xff] %v1473
      %1476 = vst [vmem:[%s224 + $0x30] sm:$0xff] %v1474
      %v1477 = vmul.f32 %v1010, %v1029
      %v1478 = vmul.f32 %v1011, %v1029
      %v1479 = vadd.f32 %v1477, 0.0
      %v1480 = vadd.f32 %v1478, 0.0
      %v1481 = vmul.f32 %v1014, %v1033
      %v1482 = vmul.f32 %v1015, %v1033
      %v1483 = vadd.f32 %v1479, %v1481
      %v1484 = vadd.f32 %v1480, %v1482
      %v1485 = vmul.f32 %v1294, %v1037
      %v1486 = vmul.f32 %v1295, %v1037
      %v1487 = vadd.f32 %v1483, %v1485
      %v1488 = vadd.f32 %v1484, %v1486
      %v1489 = vmul.f32 %v1018, %v1041
      %v1490 = vmul.f32 %v1019, %v1041
      %v1491 = vadd.f32 %v1487, %v1489
      %v1492 = vadd.f32 %v1488, %v1490
      %v1493 = vmul.f32 %v1022, %v1045
      %v1494 = vmul.f32 %v1023, %v1045
      %v1495 = vadd.f32 %v1491, %v1493
      %v1496 = vadd.f32 %v1492, %v1494
      %v1497 = vmul.f32 %v1314, %v1049
      %v1498 = vmul.f32 %v1315, %v1049
      %v1499 = vadd.f32 %v1495, %v1497
      %v1500 = vadd.f32 %v1496, %v1498
      %v1501 = vmul.f32 %v1415, %v1053
      %v1502 = vmul.f32 %v1418, %v1053
      %v1503 = vadd.f32 %v1499, %v1501
      %v1504 = vadd.f32 %v1500, %v1502
      %v1505 = vmul.f32 %v1396, %v1057
      %v1506 = vmul.f32 %v1399, %v1057
      %v1507 = vadd.f32 %v1503, %v1505
      %v1508 = vadd.f32 %v1504, %v1506
      %1510 = vrot.lane.b32.xlu0 %v1415, 120
      %v1511 = vpop.permute.xlu0 %1510
      %1512 = vrot.lane.b32.xlu0 %v1418, 120
      %v1513 = vpop.permute.xlu0 %1512
      %v1516 = vsel %vm1271, %v1511, 0.0
      %v1517 = vsel %vm1271, %v1513, 0.0
      %v1518 = vmul.f32 %v1516, %v1061
      %v1519 = vmul.f32 %v1517, %v1061
      %v1520 = vadd.f32 %v1507, %v1518
      %v1521 = vadd.f32 %v1508, %v1519
      %v1522 = vadd.f32 %v1520, %v1003
      %v1523 = vadd.f32 %v1521, %v1003
      %v1524 = vmax.f32 %v1522, 0.0
      %v1525 = vmax.f32 %v1523, 0.0
      %v1526 = vpack.c.bf16 %v1525, %v1524
      %1527 = vmatprep.subr.bf16.mxu0 0
      %1528 = vmatpush1.bf16.msra.mxu0 %v1195
      %1529 = vmatprep.subr.bf16.mxu0 0
      %1530 = vmatpush1.bf16.msra.mxu0 %v1196
      %1531 = vmatprep.subr.bf16.mxu0 0
      %1532 = vmatpush1.bf16.msra.mxu0 %v1197
      %1533 = vmatprep.subr.bf16.mxu0 0
      %1534 = vmatpush1.bf16.msra.mxu0 %v1198
      %1535 = vmatprep.subr.bf16.mxu0 0
      %1536 = vmatpush1.bf16.msra.mxu0 %v1199
      %1537 = vmatprep.subr.bf16.mxu0 0
      %1538 = vmatpush1.bf16.msra.mxu0 %v1200
      %1539 = vmatprep.subr.bf16.mxu0 0
      %1540 = vmatpush1.bf16.msra.mxu0 %v1201
      %1541 = vmatprep.subr.bf16.mxu0 0
      %1542 = vmatpush1.bf16.msra.mxu0 %v1202
      %1543 = vmatprep.subr.bf16.mxu0 0
      %1544 = vmatpush1.bf16.msra.mxu0 0
      %1545 = vmatprep.subr.bf16.mxu0 0
      %1546 = vmatpush1.bf16.msra.mxu0 0
      %1547 = vmatprep.subr.bf16.mxu0 0
      %1548 = vmatpush1.bf16.msra.mxu0 0
      %1549 = vmatprep.subr.bf16.mxu0 0
      %1550 = vmatpush1.bf16.msra.mxu0 0
      %1551 = vmatprep.subr.bf16.mxu0 0
      %1552 = vmatpush1.bf16.msra.mxu0 0
      %1553 = vmatprep.subr.bf16.mxu0 0
      %1554 = vmatpush1.bf16.msra.mxu0 0
      %1555 = vmatprep.subr.bf16.mxu0 0
      %1556 = vmatpush1.bf16.msra.mxu0 0
      %1557 = vmatprep.subr.bf16.mxu0 0
      %1558 = vmatpush1.bf16.msra.mxu0 0
      %1559 = vmatprep.mubr.bf16.mxu0 0
      %1560 = vmatmul.mubr.bf16.gmra.mrb[0].mxu0 %v1526
      %v1561 = vpop.f32.mrb[0].mxu0
      %v1562 = vadd.f32 %v1007, %v1561
      %v1563 = vpop.f32.mrb[0].mxu0
      %v1564 = vpop.f32.mrb[0].mxu0
      %v1565 = vadd.f32 %v1007, %v1564
      %v1566 = vpop.f32.mrb[0].mxu0
      %1567 = vdwg.mxu0
      %v1568 = vmax.f32 %v1562, 0.0
      %v1569 = vmax.f32 %v1565, 0.0
      %1570 = vst [vmem:[%s224 + $0x18] sm:$0xff] %v1568
      %1571 = vst [vmem:[%s224 + $0x38] sm:$0xff] %v1569
      %p1572 = scmp.lt.s32.totalorder %s16, 1
      %s1573 = scalar_select %p1572, %s16, 1
      %s1574 = smul.addr %s1573, 8
      %s1575 = smul.addr %s1574, 8
      %s1576 = scalar_lea.vmem %s5, %s1575
      // Predicated region
      $region41: #{efficient_upsampling_forward.1} parent=39 // pred_check
        %p1577 = pneg %p144
      $region42: #{efficient_upsampling_forward.1} parent=39 // pred_check_branch
        %1579 = sbr.rel (%p1577) target = $region44
      $region43: #{efficient_upsampling_forward.1} parent=39 // pred_region
        _
      $region44: #{efficient_upsampling_forward.1} parent=39 // pred_fallthru
        _
    $region40: #{efficient_upsampling_forward.1} parent=5 // pred_fallthru
      _
    %p1580 = scmp.le.s32.totalorder 2, %s11
    // Predicated region
    $region45: #{efficient_upsampling_forward.1} parent=5 // pred_check
      %p1581 = pneg %p1580
    $region46: #{efficient_upsampling_forward.1} parent=5 // pred_check_branch
      %1583 = sbr.rel (%p1581) target = $region48
    $region47: #{efficient_upsampling_forward.1} parent=5 // pred_region
      %s1584 = ssub.s32 %s11, 2
      // Predicated region
      $region49: #{efficient_upsampling_forward.1} parent=47 // pred_check
        %p1585 = pneg %p150
      $region50: #{efficient_upsampling_forward.1} parent=47 // pred_check_branch
        %1587 = sbr.rel (%p1585) target = $region52
      $region51: #{efficient_upsampling_forward.1} parent=47 // pred_region
        %p1588 = scmp.lt.s32.totalorder %s17, 1
        %s1589 = scalar_select %p1588, %s17, 1
        %s1590 = smul.addr %s1589, 8
        %s1591 = smul.addr %s1590, 8
        %s1592 = scalar_lea.vmem %s5, %s1591
      $region52: #{efficient_upsampling_forward.1} parent=47 // pred_fallthru
        _
    $region48: #{efficient_upsampling_forward.1} parent=5 // pred_fallthru
      _
  $region6: #{efficient_upsampling_forward.1} parent=0 // loop_footer
    %s15 = sadd.s32 1, %s11
  $region7: #{efficient_upsampling_forward.1} parent=0 // loop_footer_branch
    %10 = sbr.rel target = $region3
  $region8: #{efficient_upsampling_forward.1} parent=0 // loop_exit
    _

</llo_original>
